<compile_context>
chip_gen: v5e
topology: v5e:2x2
jax: 0.10.0
libtpu: 0.0.40
codegen_flags: <defaults>
</compile_context>

<pallas_src>
import functools

import jax
import jax.numpy as jnp
import numpy as np
from jax.experimental import pallas as pl
from jax.experimental.pallas import tpu as pltpu


def _round_up(x, m):
    return (x + m - 1) // m * m


def _probe_buffered():
    """Check (outside any jit) that BlockSpec(pipeline_mode=pl.Buffered(1))
    actually lowers on this backend; fall back silently otherwise."""
    if not hasattr(pl, "Buffered"):
        return False

    def _copy(x_ref, o_ref):
        o_ref[...] = x_ref[...]

    try:
        fn = pl.pallas_call(
            _copy,
            grid=(1,),
            in_specs=[pl.BlockSpec((8, 128), lambda i: (0, 0),
                                   pipeline_mode=pl.Buffered(1))],
            out_specs=pl.BlockSpec((8, 128), lambda i: (0, 0)),
            out_shape=jax.ShapeDtypeStruct((8, 128), jnp.float32),
        )
        jax.block_until_ready(fn(jnp.zeros((8, 128), jnp.float32)))
        return True
    except Exception:
        return False


_BUFFERED_OK = _probe_buffered()


def _spec(shape, index_map, *, single=False):
    """BlockSpec; grid-invariant blocks get a single pipeline buffer."""
    if single and _BUFFERED_OK:
        return pl.BlockSpec(shape, index_map, pipeline_mode=pl.Buffered(1))
    return pl.BlockSpec(shape, index_map)


def _vmem_cap_bytes():
    try:
        kind = jax.devices()[0].device_kind.lower()
    except Exception:
        kind = ""
    if "v7" in kind:
        return 48 * 2**20   # 64 MiB / TensorCore on v7x -> leave headroom
    return 96 * 2**20       # 128 MiB parts (v5e / v6e)


def naive_kernel(img_ref, wimg_ref, bimg_ref,
                 txt_ref, wtxt_ref, btxt_ref,
                 alpha_i_ref, beta_i_ref, alpha_t_ref, beta_t_ref,
                 wdec_i_ref, wdec_t_ref, bdec_ref,
                 tgt_ref,
                 out_ref, loss_ref,
                 acc_ref, *, tm, batch):
    # Read grid positions ONCE at the top of the body (never inside pl.when
    # bodies) so no program_id primitive ends up inside a cond branch.
    i = pl.program_id(0)
    k = pl.program_id(1)
    nk = pl.num_programs(1)
    row_base = i * tm

    # ---- init the image-encoder f32 accumulator at the start of the K loop ----
    @pl.when(k == 0)
    def _init():
        acc_ref[...] = jnp.zeros_like(acc_ref)

    # ---- inner K loop: pure MXU accumulate (bf16 operands, f32 accumulation) ----
    acc_ref[...] += jnp.dot(img_ref[...], wimg_ref[...],
                            preferred_element_type=jnp.float32)

    # ---- finalize on the last K step ----
    @pl.when(k == nk - 1)
    def _finalize():
        # image encoder epilogue: bias + ReLU
        img_v = jnp.maximum(acc_ref[...] + bimg_ref[...], 0.0)

        # text encoder: Linear + ReLU (K padded to 128, done in one shot)
        txt_v = jnp.dot(txt_ref[...], wtxt_ref[...],
                        preferred_element_type=jnp.float32) + btxt_ref[...]
        txt_v = jnp.maximum(txt_v, 0.0)

        # feature augmentation per half (bf16 alpha/beta, f32 math);
        # split decoder matmul replaces torch.cat([img_v, txt_v], dim=1).
        lat_i = (alpha_i_ref[...].astype(jnp.float32) * img_v
                 + beta_i_ref[...].astype(jnp.float32))
        lat_t = (alpha_t_ref[...].astype(jnp.float32) * txt_v
                 + beta_t_ref[...].astype(jnp.float32))

        out = jnp.dot(lat_i.astype(jnp.bfloat16), wdec_i_ref[...],
                      preferred_element_type=jnp.float32)
        out = out + jnp.dot(lat_t.astype(jnp.bfloat16), wdec_t_ref[...],
                            preferred_element_type=jnp.float32)
        out = out + bdec_ref[...]
        out_ref[...] = out.astype(out_ref.dtype)       # bf16 writeback

        # per-batch-tile masked sum of squared errors (f32), written exactly:
        # sse in element (0,0) of a lane-dense (8,128) block, zeros elsewhere.
        diff = out - tgt_ref[...]
        row = row_base + jax.lax.broadcasted_iota(jnp.int32, diff.shape, 0)
        diff = jnp.where(row < batch, diff, 0.0)
        sse = jnp.sum(diff * diff)
        r = jax.lax.broadcasted_iota(jnp.int32, loss_ref.shape, 0)
        c = jax.lax.broadcasted_iota(jnp.int32, loss_ref.shape, 1)
        loss_ref[...] = jnp.where((r == 0) & (c == 0), sse, 0.0)


@functools.partial(jax.jit, static_argnames=("tk",))
def naive_forward(img, txt, target, params,
                  alpha_img, alpha_txt, beta_img, beta_txt, *, tk=512):
    B = img.shape[0]
    img_flat = img.reshape(B, -1)                 # glue: NCHW -> [B, C*H*W]
    K = img_flat.shape[1]
    f_txt = txt.shape[1]
    d_img = params["w_img"].shape[1]
    d_txt = params["w_txt"].shape[1]
    n_out = params["w_dec"].shape[1]

    # ---- tile sizing ----
    # tm=128 is optimal on v5e (4x128^2 MXU); 256 better fills the 256-wide
    # MXU on v6e/v7x and halves w_img re-streaming once B is large enough.
    tm_cap = 256 if B >= 256 else 128
    tm = min(tm_cap, _round_up(B, 8))             # >= 8 sublanes per batch tile
    b_pad = _round_up(B, tm)
    num_m = b_pad // tm

    tk = min(tk, _round_up(K, 128))               # K tile (multiple of 128)
    k_pad = _round_up(K, tk)
    num_k = k_pad // tk

    d_img_p = _round_up(d_img, 128)
    d_txt_p = _round_up(d_txt, 128)
    f_txt_p = _round_up(f_txt, 128)               # lane-dense text block
    n_p = _round_up(n_out, 128)

    f32, bf16 = jnp.float32, jnp.bfloat16

    def pad2(x, rows, cols, dtype):
        return jnp.pad(x, ((0, rows - x.shape[0]),
                           (0, cols - x.shape[1]))).astype(dtype)

    img_p = pad2(img_flat, b_pad, k_pad, bf16)
    txt_p = pad2(txt, b_pad, f_txt_p, bf16)
    w_img = pad2(params["w_img"], k_pad, d_img_p, bf16)
    b_img = pad2(params["b_img"], 1, d_img_p, f32)
    w_txt = pad2(params["w_txt"], f_txt_p, d_txt_p, bf16)
    b_txt = pad2(params["b_txt"], 1, d_txt_p, f32)
    w_dec_i = pad2(params["w_dec"][:d_img], d_img_p, n_p, bf16)
    w_dec_t = pad2(params["w_dec"][d_img:], d_txt_p, n_p, bf16)
    b_dec = pad2(params["b_dec"], 1, n_p, f32)
    tgt_p = pad2(target, b_pad, n_p, f32)
    # bf16 alpha/beta: half the HBM reads + VMEM residency of these blocks.
    a_i = pad2(alpha_img, b_pad, d_img_p, bf16)
    bt_i = pad2(beta_img, b_pad, d_img_p, bf16)
    a_t = pad2(alpha_txt, b_pad, d_txt_p, bf16)
    bt_t = pad2(beta_txt, b_pad, d_txt_p, bf16)

    kernel = functools.partial(naive_kernel, tm=tm, batch=B)

    in_specs = [
        _spec((tm, tk), lambda i, k: (i, k)),                     # img tile
        _spec((tk, d_img_p), lambda i, k: (k, 0)),                # w_img K-slab
        _spec((1, d_img_p), lambda i, k: (0, 0), single=True),    # b_img
        _spec((tm, f_txt_p), lambda i, k: (i, 0)),                # txt
        _spec((f_txt_p, d_txt_p), lambda i, k: (0, 0), single=True),  # w_txt
        _spec((1, d_txt_p), lambda i, k: (0, 0), single=True),    # b_txt
        _spec((tm, d_img_p), lambda i, k: (i, 0)),                # alpha_img
        _spec((tm, d_img_p), lambda i, k: (i, 0)),                # beta_img
        _spec((tm, d_txt_p), lambda i, k: (i, 0)),                # alpha_txt
        _spec((tm, d_txt_p), lambda i, k: (i, 0)),                # beta_txt
        _spec((d_img_p, n_p), lambda i, k: (0, 0), single=True),  # w_dec img half
        _spec((d_txt_p, n_p), lambda i, k: (0, 0), single=True),  # w_dec txt half
        _spec((1, n_p), lambda i, k: (0, 0), single=True),        # b_dec
        _spec((tm, n_p), lambda i, k: (i, 0)),                    # target
    ]
    out_specs = (
        pl.BlockSpec((tm, n_p), lambda i, k: (i, 0)),             # decoder output
        pl.BlockSpec((8, 128), lambda i, k: (i, 0)),              # per-tile SSE
    )
    out_shape = (
        jax.ShapeDtypeStruct((b_pad, n_p), jnp.bfloat16),
        jax.ShapeDtypeStruct((num_m * 8, 128), jnp.float32),
    )

    # ---- explicit scoped-VMEM budget: count every block double-buffered
    #      (conservative even where Buffered(1) applies), +25% headroom. ----
    resident = 2 * (
        tm * tk * 2 + tk * d_img_p * 2 + 8 * d_img_p * 4
        + tm * f_txt_p * 2 + f_txt_p * d_txt_p * 2 + 8 * d_txt_p * 4
        + 2 * tm * d_img_p * 2 + 2 * tm * d_txt_p * 2
        + d_img_p * n_p * 2 + d_txt_p * n_p * 2 + 8 * n_p * 4
        + tm * n_p * 4 + tm * n_p * 2 + 8 * 128 * 4
    ) + tm * d_img_p * 4
    vmem_limit = int(min(_vmem_cap_bytes(),
                         max(32 * 2**20, int(resident * 1.25))))

    out_p, loss_parts = pl.pallas_call(
        kernel,
        grid=(num_m, num_k),
        in_specs=in_specs,
        out_specs=out_specs,
        out_shape=out_shape,
        scratch_shapes=[pltpu.VMEM((tm, d_img_p), jnp.float32)],
        compiler_params=pltpu.CompilerParams(
            dimension_semantics=("parallel", "arbitrary"),
            vmem_limit_bytes=vmem_limit),
    )(img_p, w_img, b_img, txt_p, w_txt, b_txt,
      a_i, bt_i, a_t, bt_t, w_dec_i, w_dec_t, b_dec, tgt_p)

    loss = jnp.sum(loss_parts) / (B * n_out)      # tiny glue reduction (exact sum)
    output = out_p[:B, :n_out].astype(jnp.float32)
    return loss, output


def make_fa_noise(key, B, d_img, d_txt, sig1, sig2, fa=True):
    """alpha ~ N(1, sig1), beta ~ N(0, sig2) over the (split) latent."""
    if fa:
        k1, k2, k3, k4 = jax.random.split(key, 4)
        alpha_img = 1.0 + sig1 * jax.random.normal(k1, (B, d_img), jnp.float32)
        alpha_txt = 1.0 + sig1 * jax.random.normal(k2, (B, d_txt), jnp.float32)
        beta_img = sig2 * jax.random.normal(k3, (B, d_img), jnp.float32)
        beta_txt = sig2 * jax.random.normal(k4, (B, d_txt), jnp.float32)
    else:
        alpha_img = jnp.ones((B, d_img), jnp.float32)
        alpha_txt = jnp.ones((B, d_txt), jnp.float32)
        beta_img = jnp.zeros((B, d_img), jnp.float32)
        beta_txt = jnp.zeros((B, d_txt), jnp.float32)
    return alpha_img, alpha_txt, beta_img, beta_txt


def naive_reference(img, txt, target, params,
                    alpha_img, alpha_txt, beta_img, beta_txt):
    """Pure-JAX f32 reference (mirrors the PyTorch forward)."""
    B = img.shape[0]
    x = img.reshape(B, -1)
    img_v = jnp.maximum(x @ params["w_img"] + params["b_img"], 0.0)
    txt_v = jnp.maximum(txt @ params["w_txt"] + params["b_txt"], 0.0)
    latent = jnp.concatenate(
        [alpha_img * img_v + beta_img, alpha_txt * txt_v + beta_txt], axis=1)
    out = latent @ params["w_dec"] + params["b_dec"]
    return jnp.mean((out - target) ** 2), out


def init_params(key, f_img, f_txt, d_img, d_txt, n_out):
    ks = jax.random.split(key, 6)
    scale = 0.02
    return {
        "w_img": scale * jax.random.normal(ks[0], (f_img, d_img), jnp.float32),
        "b_img": scale * jax.random.normal(ks[1], (1, d_img), jnp.float32),
        "w_txt": scale * jax.random.normal(ks[2], (f_txt, d_txt), jnp.float32),
        "b_txt": scale * jax.random.normal(ks[3], (1, d_txt), jnp.float32),
        "w_dec": scale * jax.random.normal(ks[4], (d_img + d_txt, n_out), jnp.float32),
        "b_dec": scale * jax.random.normal(ks[5], (1, n_out), jnp.float32),
    }


if __name__ == "__main__":
    # Small shapes consistent with the forward pass (K = C*H*W = 1024 so the
    # K-tiled accumulator path actually runs with num_k = 2).
    B, C, H, W = 2, 4, 16, 16          # image: NCHW
    F_TXT = 32                         # text feature dim
    D_IMG, D_TXT = 128, 128            # encoder output dims (lane-aligned)
    N_OUT = 128                        # decoder output dim
    SIG1, SIG2 = 0.1, 0.05             # args.sig1, args.sig2

    root = jax.random.PRNGKey(0)
    k_img, k_txt, k_tgt, k_par, k_noise = jax.random.split(root, 5)

    img = jax.random.normal(k_img, (B, C, H, W), jnp.float32)
    txt = jax.random.normal(k_txt, (B, F_TXT), jnp.float32)
    target = jax.random.normal(k_tgt, (B, N_OUT), jnp.float32)
    params = init_params(k_par, C * H * W, F_TXT, D_IMG, D_TXT, N_OUT)
    noise = make_fa_noise(k_noise, B, D_IMG, D_TXT, SIG1, SIG2, fa=True)

    loss, output = naive_forward(img, txt, target, params, *noise)
    jax.block_until_ready((loss, output))

    ref_loss, ref_out = naive_reference(img, txt, target, params, *noise)

    assert output.shape == (B, N_OUT)
    assert loss.shape == ()
    np.testing.assert_allclose(np.asarray(output), np.asarray(ref_out),
                               atol=5e-2, rtol=5e-2)
    np.testing.assert_allclose(float(loss), float(ref_loss),
                               atol=5e-2, rtol=5e-2)
    print("KERNEL_OK")
</pallas_src>

<mosaic_0001>
module attributes {stable_mosaic.version = 11 : i64} {
  func.func @_copy(%arg0: i32, %arg1: memref<8x128xf32, #tpu.memory_space<vmem>>, %arg2: memref<8x128xf32, #tpu.memory_space<vmem>>) attributes {dimension_semantics = [#tpu.dimension_semantics<arbitrary>], iteration_bounds = array<i64: 1>, scalar_prefetch = 0 : i64, scratch_operands = 0 : i64, tpu.core_type = #tpu.core_type<tc>, window_params = [{pipeline_mode = #tpu.pipeline_mode<synchronous>, transform_indices = @transform_0, window_bounds = array<i64: 8, 128>}, {pipeline_mode = #tpu.pipeline_mode<synchronous>, transform_indices = @transform_1, window_bounds = array<i64: 8, 128>}]} {
    %c0 = arith.constant 0 : index
    %c0_0 = arith.constant 0 : index
    %0 = vector.load %arg1[%c0, %c0_0] : memref<8x128xf32, #tpu.memory_space<vmem>>, vector<8x128xf32>
    %c0_1 = arith.constant 0 : index
    %c0_2 = arith.constant 0 : index
    %1 = vector.load %arg2[%c0_1, %c0_2] : memref<8x128xf32, #tpu.memory_space<vmem>>, vector<8x128xf32>
    tpu.vector_store %arg2[%c0_1, %c0_2], %0 {strides = array<i32>} : memref<8x128xf32, #tpu.memory_space<vmem>>, vector<8x128xf32>,
    return
  }
  func.func @transform_0(%arg0: i32) -> (i32, i32) {
    %c0_i32 = arith.constant 0 : i32
    %c0_i32_0 = arith.constant 0 : i32
    %c0_i32_1 = arith.constant 0 : i32
    return %c0_i32, %c0_i32_0 : i32, i32
  }
  func.func @transform_1(%arg0: i32) -> (i32, i32) {
    %c0_i32 = arith.constant 0 : i32
    %c0_i32_0 = arith.constant 0 : i32
    %c0_i32_1 = arith.constant 0 : i32
    return %c0_i32, %c0_i32_0 : i32, i32
  }
}

module attributes {stable_mosaic.version = 11 : i64} {
  func.func @naive_kernel(%arg0: i32, %arg1: i32, %arg2: memref<8x512xbf16, #tpu.memory_space<vmem>>, %arg3: memref<512x128xbf16, #tpu.memory_space<vmem>>, %arg4: memref<1x128xf32, #tpu.memory_space<vmem>>, %arg5: memref<8x128xbf16, #tpu.memory_space<vmem>>, %arg6: memref<128x128xbf16, #tpu.memory_space<vmem>>, %arg7: memref<1x128xf32, #tpu.memory_space<vmem>>, %arg8: memref<8x128xbf16, #tpu.memory_space<vmem>>, %arg9: memref<8x128xbf16, #tpu.memory_space<vmem>>, %arg10: memref<8x128xbf16, #tpu.memory_space<vmem>>, %arg11: memref<8x128xbf16, #tpu.memory_space<vmem>>, %arg12: memref<128x128xbf16, #tpu.memory_space<vmem>>, %arg13: memref<128x128xbf16, #tpu.memory_space<vmem>>, %arg14: memref<1x128xf32, #tpu.memory_space<vmem>>, %arg15: memref<8x128xf32, #tpu.memory_space<vmem>>, %arg16: memref<8x128xbf16, #tpu.memory_space<vmem>>, %arg17: memref<8x128xf32, #tpu.memory_space<vmem>>, %arg18: memref<8x128xf32, #tpu.memory_space<vmem>>) attributes {dimension_semantics = [#tpu.dimension_semantics<parallel>, #tpu.dimension_semantics<arbitrary>], iteration_bounds = array<i64: 1, 2>, scalar_prefetch = 0 : i64, scratch_operands = 1 : i64, tpu.core_type = #tpu.core_type<tc>, window_params = [{transform_indices = @transform_0, window_bounds = array<i64: 8, 512>}, {transform_indices = @transform_1, window_bounds = array<i64: 512, 128>}, {pipeline_mode = #tpu.pipeline_mode<synchronous>, transform_indices = @transform_2, window_bounds = array<i64: 1, 128>}, {transform_indices = @transform_3, window_bounds = array<i64: 8, 128>}, {pipeline_mode = #tpu.pipeline_mode<synchronous>, transform_indices = @transform_4, window_bounds = array<i64: 128, 128>}, {pipeline_mode = #tpu.pipeline_mode<synchronous>, transform_indices = @transform_5, window_bounds = array<i64: 1, 128>}, {transform_indices = @transform_6, window_bounds = array<i64: 8, 128>}, {transform_indices = @transform_7, window_bounds = array<i64: 8, 128>}, {transform_indices = @transform_8, window_bounds = array<i64: 8, 128>}, {transform_indices = @transform_9, window_bounds = array<i64: 8, 128>}, {pipeline_mode = #tpu.pipeline_mode<synchronous>, transform_indices = @transform_10, window_bounds = array<i64: 128, 128>}, {pipeline_mode = #tpu.pipeline_mode<synchronous>, transform_indices = @transform_11, window_bounds = array<i64: 128, 128>}, {pipeline_mode = #tpu.pipeline_mode<synchronous>, transform_indices = @transform_12, window_bounds = array<i64: 1, 128>}, {transform_indices = @transform_13, window_bounds = array<i64: 8, 128>}, {transform_indices = @transform_14, window_bounds = array<i64: 8, 128>}, {transform_indices = @transform_15, window_bounds = array<i64: 8, 128>}]} {
    %c8_i32 = arith.constant 8 : i32
    %0 = arith.muli %arg0, %c8_i32 : i32
    %c0_i32 = arith.constant 0 : i32
    %1 = arith.cmpi eq, %arg1, %c0_i32 : i32
    %2 = arith.extui %1 : i1 to i32
    %c0_i32_0 = arith.constant 0 : i32
    %3 = arith.cmpi ne, %2, %c0_i32_0 : i32
    scf.if %3 {
      %cst_9 = arith.constant 0.000000e+00 : f32
      %13 = vector.broadcast %cst_9 : f32 to vector<8x128xf32>
      %c0_10 = arith.constant 0 : index
      %c0_11 = arith.constant 0 : index
      %14 = vector.load %arg18[%c0_10, %c0_11] : memref<8x128xf32, #tpu.memory_space<vmem>>, vector<8x128xf32>
      tpu.vector_store %arg18[%c0_10, %c0_11], %13 {strides = array<i32>} : memref<8x128xf32, #tpu.memory_space<vmem>>, vector<8x128xf32>,
    } else {
    }
    %c0 = arith.constant 0 : index
    %c0_1 = arith.constant 0 : index
    %4 = vector.load %arg18[%c0, %c0_1] : memref<8x128xf32, #tpu.memory_space<vmem>>, vector<8x128xf32>
    %c0_2 = arith.constant 0 : index
    %c0_3 = arith.constant 0 : index
    %5 = vector.load %arg2[%c0_2, %c0_3] : memref<8x512xbf16, #tpu.memory_space<vmem>>, vector<8x512xbf16>
    %c0_4 = arith.constant 0 : index
    %c0_5 = arith.constant 0 : index
    %6 = vector.load %arg3[%c0_4, %c0_5] : memref<512x128xbf16, #tpu.memory_space<vmem>>, vector<512x128xbf16>
    %cst = arith.constant dense<0.000000e+00> : vector<8x128xf32>
    %7 = tpu.matmul %5, %6, %cst {dimension_numbers = #tpu.dot_dimension_numbers<[1], [0], [0], [1], [0, 0, 1, 1], [], []>} : vector<8x512xbf16>, vector<512x128xbf16>, vector<8x128xf32> -> vector<8x128xf32>
    %8 = arith.addf %4, %7 : vector<8x128xf32>
    %c0_6 = arith.constant 0 : index
    %c0_7 = arith.constant 0 : index
    %9 = vector.load %arg18[%c0_6, %c0_7] : memref<8x128xf32, #tpu.memory_space<vmem>>, vector<8x128xf32>
    tpu.vector_store %arg18[%c0_6, %c0_7], %8 {strides = array<i32>} : memref<8x128xf32, #tpu.memory_space<vmem>>, vector<8x128xf32>,
    %c1_i32 = arith.constant 1 : i32
    %10 = arith.cmpi eq, %arg1, %c1_i32 : i32
    %11 = arith.extui %10 : i1 to i32
    %c0_i32_8 = arith.constant 0 : i32
    %12 = arith.cmpi ne, %11, %c0_i32_8 : i32
    scf.if %12 {
      %c0_9 = arith.constant 0 : index
      %c0_10 = arith.constant 0 : index
      %13 = vector.load %arg18[%c0_9, %c0_10] : memref<8x128xf32, #tpu.memory_space<vmem>>, vector<8x128xf32>
      %c0_11 = arith.constant 0 : index
      %c0_12 = arith.constant 0 : index
      %14 = vector.load %arg4[%c0_11, %c0_12] : memref<1x128xf32, #tpu.memory_space<vmem>>, vector<1x128xf32>
      %15 = vector.broadcast %14 : vector<1x128xf32> to vector<8x128xf32>
      %16 = arith.addf %13, %15 : vector<8x128xf32>
      %cst_13 = arith.constant 0.000000e+00 : f32
      %17 = vector.broadcast %cst_13 : f32 to vector<8x128xf32>
      %18 = arith.maximumf %16, %17 : vector<8x128xf32>
      %c0_14 = arith.constant 0 : index
      %c0_15 = arith.constant 0 : index
      %19 = vector.load %arg5[%c0_14, %c0_15] : memref<8x128xbf16, #tpu.memory_space<vmem>>, vector<8x128xbf16>
      %c0_16 = arith.constant 0 : index
      %c0_17 = arith.constant 0 : index
      %20 = vector.load %arg6[%c0_16, %c0_17] : memref<128x128xbf16, #tpu.memory_space<vmem>>, vector<128x128xbf16>
      %cst_18 = arith.constant dense<0.000000e+00> : vector<8x128xf32>
      %21 = tpu.matmul %19, %20, %cst_18 {dimension_numbers = #tpu.dot_dimension_numbers<[1], [0], [0], [1], [0, 0, 1, 1], [], []>} : vector<8x128xbf16>, vector<128x128xbf16>, vector<8x128xf32> -> vector<8x128xf32>
      %c0_19 = arith.constant 0 : index
      %c0_20 = arith.constant 0 : index
      %22 = vector.load %arg7[%c0_19, %c0_20] : memref<1x128xf32, #tpu.memory_space<vmem>>, vector<1x128xf32>
      %23 = vector.broadcast %22 : vector<1x128xf32> to vector<8x128xf32>
      %24 = arith.addf %21, %23 : vector<8x128xf32>
      %cst_21 = arith.constant 0.000000e+00 : f32
      %25 = vector.broadcast %cst_21 : f32 to vector<8x128xf32>
      %26 = arith.maximumf %24, %25 : vector<8x128xf32>
      %c0_22 = arith.constant 0 : index
      %c0_23 = arith.constant 0 : index
      %27 = vector.load %arg8[%c0_22, %c0_23] : memref<8x128xbf16, #tpu.memory_space<vmem>>, vector<8x128xbf16>
      %28 = arith.extf %27 : vector<8x128xbf16> to vector<8x128xf32>
      %29 = arith.mulf %28, %18 : vector<8x128xf32>
      %c0_24 = arith.constant 0 : index
      %c0_25 = arith.constant 0 : index
      %30 = vector.load %arg9[%c0_24, %c0_25] : memref<8x128xbf16, #tpu.memory_space<vmem>>, vector<8x128xbf16>
      %31 = arith.extf %30 : vector<8x128xbf16> to vector<8x128xf32>
      %32 = arith.addf %29, %31 : vector<8x128xf32>
      %c0_26 = arith.constant 0 : index
      %c0_27 = arith.constant 0 : index
      %33 = vector.load %arg10[%c0_26, %c0_27] : memref<8x128xbf16, #tpu.memory_space<vmem>>, vector<8x128xbf16>
      %34 = arith.extf %33 : vector<8x128xbf16> to vector<8x128xf32>
      %35 = arith.mulf %34, %26 : vector<8x128xf32>
      %c0_28 = arith.constant 0 : index
      %c0_29 = arith.constant 0 : index
      %36 = vector.load %arg11[%c0_28, %c0_29] : memref<8x128xbf16, #tpu.memory_space<vmem>>, vector<8x128xbf16>
      %37 = arith.extf %36 : vector<8x128xbf16> to vector<8x128xf32>
      %38 = arith.addf %35, %37 : vector<8x128xf32>
      %39 = arith.truncf %32 : vector<8x128xf32> to vector<8x128xbf16>
      %c0_30 = arith.constant 0 : index
      %c0_31 = arith.constant 0 : index
      %40 = vector.load %arg12[%c0_30, %c0_31] : memref<128x128xbf16, #tpu.memory_space<vmem>>, vector<128x128xbf16>
      %cst_32 = arith.constant dense<0.000000e+00> : vector<8x128xf32>
      %41 = tpu.matmul %39, %40, %cst_32 {dimension_numbers = #tpu.dot_dimension_numbers<[1], [0], [0], [1], [0, 0, 1, 1], [], []>} : vector<8x128xbf16>, vector<128x128xbf16>, vector<8x128xf32> -> vector<8x128xf32>
      %42 = arith.truncf %38 : vector<8x128xf32> to vector<8x128xbf16>
      %c0_33 = arith.constant 0 : index
      %c0_34 = arith.constant 0 : index
      %43 = vector.load %arg13[%c0_33, %c0_34] : memref<128x128xbf16, #tpu.memory_space<vmem>>, vector<128x128xbf16>
      %cst_35 = arith.constant dense<0.000000e+00> : vector<8x128xf32>
      %44 = tpu.matmul %42, %43, %cst_35 {dimension_numbers = #tpu.dot_dimension_numbers<[1], [0], [0], [1], [0, 0, 1, 1], [], []>} : vector<8x128xbf16>, vector<128x128xbf16>, vector<8x128xf32> -> vector<8x128xf32>
      %45 = arith.addf %41, %44 : vector<8x128xf32>
      %c0_36 = arith.constant 0 : index
      %c0_37 = arith.constant 0 : index
      %46 = vector.load %arg14[%c0_36, %c0_37] : memref<1x128xf32, #tpu.memory_space<vmem>>, vector<1x128xf32>
      %47 = vector.broadcast %46 : vector<1x128xf32> to vector<8x128xf32>
      %48 = arith.addf %45, %47 : vector<8x128xf32>
      %49 = arith.truncf %48 : vector<8x128xf32> to vector<8x128xbf16>
      %c0_38 = arith.constant 0 : index
      %c0_39 = arith.constant 0 : index
      %50 = vector.load %arg16[%c0_38, %c0_39] : memref<8x128xbf16, #tpu.memory_space<vmem>>, vector<8x128xbf16>
      tpu.vector_store %arg16[%c0_38, %c0_39], %49 {strides = array<i32>} : memref<8x128xbf16, #tpu.memory_space<vmem>>, vector<8x128xbf16>,
      %c0_40 = arith.constant 0 : index
      %c0_41 = arith.constant 0 : index
      %51 = vector.load %arg15[%c0_40, %c0_41] : memref<8x128xf32, #tpu.memory_space<vmem>>, vector<8x128xf32>
      %52 = arith.subf %48, %51 : vector<8x128xf32>
      %53 = tpu.iota {dimensions = array<i32: 0>} : vector<8x128xi32>
      %54 = vector.broadcast %0 : i32 to vector<8x128xi32>
      %55 = arith.addi %54, %53 : vector<8x128xi32>
      %c2_i32 = arith.constant 2 : i32
      %56 = vector.broadcast %c2_i32 : i32 to vector<8x128xi32>
      %57 = arith.cmpi slt, %55, %56 : vector<8x128xi32>
      %cst_42 = arith.constant 0.000000e+00 : f32
      %58 = vector.broadcast %cst_42 : f32 to vector<8x128xf32>
      %59 = arith.select %57, %52, %58 : vector<8x128xi1>, vector<8x128xf32>
      %60 = arith.mulf %59, %59 : vector<8x128xf32>
      %61 = vector.shape_cast %60 : vector<8x128xf32> to vector<1x8x128xf32>
      %cst_43 = arith.constant dense<0.000000e+00> : vector<1xf32>
      %62 = vector.multi_reduction <add>, %61, %cst_43 [1, 2] : vector<1x8x128xf32> to vector<1xf32>
      %63 = vector.shape_cast %62 : vector<1xf32> to vector<1x1x1xf32>
      %64 = vector.extract %63[0, 0, 0] : f32 from vector<1x1x1xf32>
      %65 = tpu.iota {dimensions = array<i32: 0>} : vector<8x128xi32>
      %66 = tpu.iota {dimensions = array<i32: 1>} : vector<8x128xi32>
      %c0_i32_44 = arith.constant 0 : i32
      %67 = vector.broadcast %c0_i32_44 : i32 to vector<8x128xi32>
      %68 = arith.cmpi eq, %65, %67 : vector<8x128xi32>
      %c0_i32_45 = arith.constant 0 : i32
      %69 = vector.broadcast %c0_i32_45 : i32 to vector<8x128xi32>
      %70 = arith.cmpi eq, %66, %69 : vector<8x128xi32>
      %71 = arith.andi %68, %70 : vector<8x128xi1>
      %cst_46 = arith.constant 0.000000e+00 : f32
      %72 = vector.broadcast %64 : f32 to vector<8x128xf32>
      %73 = vector.broadcast %cst_46 : f32 to vector<8x128xf32>
      %74 = arith.select %71, %72, %73 : vector<8x128xi1>, vector<8x128xf32>
      %c0_47 = arith.constant 0 : index
      %c0_48 = arith.constant 0 : index
      %75 = vector.load %arg17[%c0_47, %c0_48] : memref<8x128xf32, #tpu.memory_space<vmem>>, vector<8x128xf32>
      tpu.vector_store %arg17[%c0_47, %c0_48], %74 {strides = array<i32>} : memref<8x128xf32, #tpu.memory_space<vmem>>, vector<8x128xf32>,
    } else {
    }
    return
  }
  func.func @transform_0(%arg0: i32, %arg1: i32) -> (i32, i32) {
    %c0_i32 = arith.constant 0 : i32
    return %arg0, %arg1 : i32, i32
  }
  func.func @transform_1(%arg0: i32, %arg1: i32) -> (i32, i32) {
    %c0_i32 = arith.constant 0 : i32
    %c0_i32_0 = arith.constant 0 : i32
    return %arg1, %c0_i32 : i32, i32
  }
  func.func @transform_2(%arg0: i32, %arg1: i32) -> (i32, i32) {
    %c0_i32 = arith.constant 0 : i32
    %c0_i32_0 = arith.constant 0 : i32
    %c0_i32_1 = arith.constant 0 : i32
    return %c0_i32, %c0_i32_0 : i32, i32
  }
  func.func @transform_3(%arg0: i32, %arg1: i32) -> (i32, i32) {
    %c0_i32 = arith.constant 0 : i32
    %c0_i32_0 = arith.constant 0 : i32
    return %arg0, %c0_i32 : i32, i32
  }
  func.func @transform_4(%arg0: i32, %arg1: i32) -> (i32, i32) {
    %c0_i32 = arith.constant 0 : i32
    %c0_i32_0 = arith.constant 0 : i32
    %c0_i32_1 = arith.constant 0 : i32
    return %c0_i32, %c0_i32_0 : i32, i32
  }
  func.func @transform_5(%arg0: i32, %arg1: i32) -> (i32, i32) {
    %c0_i32 = arith.constant 0 : i32
    %c0_i32_0 = arith.constant 0 : i32
    %c0_i32_1 = arith.constant 0 : i32
    return %c0_i32, %c0_i32_0 : i32, i32
  }
  func.func @transform_6(%arg0: i32, %arg1: i32) -> (i32, i32) {
    %c0_i32 = arith.constant 0 : i32
    %c0_i32_0 = arith.constant 0 : i32
    return %arg0, %c0_i32 : i32, i32
  }
  func.func @transform_7(%arg0: i32, %arg1: i32) -> (i32, i32) {
    %c0_i32 = arith.constant 0 : i32
    %c0_i32_0 = arith.constant 0 : i32
    return %arg0, %c0_i32 : i32, i32
  }
  func.func @transform_8(%arg0: i32, %arg1: i32) -> (i32, i32) {
    %c0_i32 = arith.constant 0 : i32
    %c0_i32_0 = arith.constant 0 : i32
    return %arg0, %c0_i32 : i32, i32
  }
  func.func @transform_9(%arg0: i32, %arg1: i32) -> (i32, i32) {
    %c0_i32 = arith.constant 0 : i32
    %c0_i32_0 = arith.constant 0 : i32
    return %arg0, %c0_i32 : i32, i32
  }
  func.func @transform_10(%arg0: i32, %arg1: i32) -> (i32, i32) {
    %c0_i32 = arith.constant 0 : i32
    %c0_i32_0 = arith.constant 0 : i32
    %c0_i32_1 = arith.constant 0 : i32
    return %c0_i32, %c0_i32_0 : i32, i32
  }
  func.func @transform_11(%arg0: i32, %arg1: i32) -> (i32, i32) {
    %c0_i32 = arith.constant 0 : i32
    %c0_i32_0 = arith.constant 0 : i32
    %c0_i32_1 = arith.constant 0 : i32
    return %c0_i32, %c0_i32_0 : i32, i32
  }
  func.func @transform_12(%arg0: i32, %arg1: i32) -> (i32, i32) {
    %c0_i32 = arith.constant 0 : i32
    %c0_i32_0 = arith.constant 0 : i32
    %c0_i32_1 = arith.constant 0 : i32
    return %c0_i32, %c0_i32_0 : i32, i32
  }
  func.func @transform_13(%arg0: i32, %arg1: i32) -> (i32, i32) {
    %c0_i32 = arith.constant 0 : i32
    %c0_i32_0 = arith.constant 0 : i32
    return %arg0, %c0_i32 : i32, i32
  }
  func.func @transform_14(%arg0: i32, %arg1: i32) -> (i32, i32) {
    %c0_i32 = arith.constant 0 : i32
    %c0_i32_0 = arith.constant 0 : i32
    return %arg0, %c0_i32 : i32, i32
  }
  func.func @transform_15(%arg0: i32, %arg1: i32) -> (i32, i32) {
    %c0_i32 = arith.constant 0 : i32
    %c0_i32_0 = arith.constant 0 : i32
    return %arg0, %c0_i32 : i32, i32
  }
}

</mosaic_0001>

<llo_original>
// kernel: tpu_custom_call.1
$region0: #{tpu_custom_call.1}
  #allocation0 [shape = 'u32[]', space=smem, size = 0x4, offset = 0x4, fixed_abs, tag = 'smem constant byte address 0x4 - core index']
  #allocation1 [shape = 'u32[72,128]{1,0:T(1,128)}', space=vmem, size = 0x9000, scoped, tag = 'internal scratch']
  %s0 = inlined_call_operand.hbm [shape: f32[8,128], index: 0, kind: input, shape index: {}]
  %s1 = inlined_call_operand.hbm [shape: f32[8,128], index: 1, kind: output, shape index: {}]
  %s2 = sld [smem:[#allocation0]]
  $region18: #{tpu_custom_call.1} parent=0
    _
  %s4 = ssub.s32 1, %s2
  %s5 = scalar_select 0, %s4, %s2
  $region1: #{tpu_custom_call.1} parent=0
    #allocation2 [shape = 'u8[4096]{0}', space=vmem, size = 0x1000, scoped, tag = 'input window, operand 0, single buffered']
    #allocation3 [shape = 's32[1]{0}', space=sflag, size = 0x4, scoped, tag = 'scoped memory for tpu_custom_call.1']
    #allocation4 [shape = 's32[1]{0}', space=sflag, size = 0x4, scoped, tag = 'scoped memory for tpu_custom_call.1']
    #allocation5 [shape = 'u8[4096]{0}', space=vmem, size = 0x1000, scoped, tag = 'output window, operand 0, single buffered']
    %6 = vsyncpa [#allocation3], 0
    %7 = vsyncpa [#allocation4], 0
    // Predicated region
    $region2: #{tpu_custom_call.1} parent=1 // pred_check
      _
    $region3: #{tpu_custom_call.1} parent=1 // pred_check_branch
      %9 = sbr.rel (0) target = $region5
    $region4: #{tpu_custom_call.1} parent=1 // pred_region
      %11 = vsyncadd [#allocation3], 0
      %s13 = sshll.u32 %s0, 4
      %s14 = int_to_ptr.hbm [resolvable:$true] %s13
      %s15 = sshll.u32 [#allocation2], 4
      %s16 = int_to_ptr.vmem [resolvable:$true] %s15
      %18 = dma.hbm_to_vmem [thread:$0]  %s14, 128, %s16, [#allocation3]
    $region5: #{tpu_custom_call.1} parent=1 // pred_fallthru
      _
    // Predicated region
    $region6: #{tpu_custom_call.1} parent=1 // pred_check
      _
    $region7: #{tpu_custom_call.1} parent=1 // pred_check_branch
      %20 = sbr.rel (0) target = $region9
    $region8: #{tpu_custom_call.1} parent=1 // pred_region
      %22 = dma.done [#allocation3], 128
    $region9: #{tpu_custom_call.1} parent=1 // pred_fallthru
      _
    %v23 = vld [vmem:[#allocation2] sm:$0xff]
    %24 = vst [vmem:[#allocation5] sm:$0xff] %v23
    // Predicated region
    $region10: #{tpu_custom_call.1} parent=1 // pred_check
      _
    $region11: #{tpu_custom_call.1} parent=1 // pred_check_branch
      %26 = sbr.rel (0) target = $region13
    $region12: #{tpu_custom_call.1} parent=1 // pred_region
      %28 = vsyncadd [#allocation4], 0
      %s30 = sshll.u32 [#allocation5], 4
      %s31 = int_to_ptr.vmem [resolvable:$true] %s30
      %s32 = sshll.u32 %s1, 4
      %s33 = int_to_ptr.hbm [resolvable:$true] %s32
      %35 = dma.vmem_to_hbm [thread:$0]  %s31, 128, %s33, [#allocation4]
    $region13: #{tpu_custom_call.1} parent=1 // pred_fallthru
      _
    // Predicated region
    $region14: #{tpu_custom_call.1} parent=1 // pred_check
      _
    $region15: #{tpu_custom_call.1} parent=1 // pred_check_branch
      %37 = sbr.rel (0) target = $region17
    $region16: #{tpu_custom_call.1} parent=1 // pred_region
      %39 = dma.done [#allocation4], 128
    $region17: #{tpu_custom_call.1} parent=1 // pred_fallthru
      _
    %40 = vsyncpa [#allocation3], 1
    %41 = vsyncpa [#allocation4], 1

// kernel: naive_forward.1
$region0: #{naive_forward.1}
  #allocation0 [shape = 'u32[]', space=smem, size = 0x4, offset = 0x4, fixed_abs, tag = 'smem constant byte address 0x4 - core index']
  #allocation1 [shape = 'u32[72,128]{1,0:T(1,128)}', space=vmem, size = 0x9000, scoped, tag = 'internal scratch']
  #allocation2 [shape = 'f32[8,128]{1,0:T(8,128)}', space=vmem, size = 0x1000, scoped, tag = 'scratch operand']
  %s0 = inlined_call_operand.vmem [shape: bf16[8,1024], index: 0, kind: input, shape index: {}]
  %s1 = inlined_call_operand.vmem [shape: bf16[1024,128], index: 1, kind: input, shape index: {}]
  %s2 = inlined_call_operand.vmem [shape: f32[1,128], index: 2, kind: input, shape index: {}]
  %s3 = inlined_call_operand.vmem [shape: bf16[8,128], index: 3, kind: input, shape index: {}]
  %s4 = inlined_call_operand.vmem [shape: bf16[128,128], index: 4, kind: input, shape index: {}]
  %s5 = inlined_call_operand.vmem [shape: f32[1,128], index: 5, kind: input, shape index: {}]
  %s6 = inlined_call_operand.vmem [shape: bf16[8,128], index: 6, kind: input, shape index: {}]
  %s7 = inlined_call_operand.vmem [shape: bf16[8,128], index: 7, kind: input, shape index: {}]
  %s8 = inlined_call_operand.vmem [shape: bf16[8,128], index: 8, kind: input, shape index: {}]
  %s9 = inlined_call_operand.vmem [shape: bf16[8,128], index: 9, kind: input, shape index: {}]
  %s10 = inlined_call_operand.vmem [shape: bf16[128,128], index: 10, kind: input, shape index: {}]
  %s11 = inlined_call_operand.vmem [shape: bf16[128,128], index: 11, kind: input, shape index: {}]
  %s12 = inlined_call_operand.vmem [shape: f32[1,128], index: 12, kind: input, shape index: {}]
  %s13 = inlined_call_operand.vmem [shape: f32[8,128], index: 13, kind: input, shape index: {}]
  %s14 = inlined_call_operand.vmem [shape: bf16[8,128], index: 14, kind: output, shape index: {0}]
  %s15 = inlined_call_operand.vmem [shape: f32[8,128], index: 15, kind: output, shape index: {1}]
  %16 = xla_tuple %s14, %s15
  %s17 = sld [smem:[#allocation0]]
  $region105: #{naive_forward.1} parent=0
    _
  %s19 = ssub.s32 1, %s17
  %s20 = scalar_select 0, %s19, %s17
  loop: start=0, step=1, limit=4
  $region2: #{naive_forward.1} parent=0 // loop_pre_header
    _
  $region3: #{naive_forward.1} parent=0 // loop_header
    %s22 = sphi 0, %s26
    %p23 = scmp.ge.s32.totalorder %s22, 4
    %s29 = sphi 0, %s41
    %s30 = sphi 0, %s37
    %s31 = sphi 0, %s29
    %s32 = sphi 0, %s30
    %s33 = sphi 0, %s31
    %s34 = sphi 0, %s32
    %s46 = sphi 0, %s48
    %s49 = sphi 0, %s46
    %s50 = sphi 0, %s49
    %s66 = sphi 0, %s50
    %s72 = sphi 0, %s74
    %s75 = sphi 0, %s72
    %s76 = sphi 0, %s75
    %s92 = sphi 0, %s76
    %s96 = sphi 0, %s96
    %s98 = sphi 0, %s96
    %s99 = sphi 0, %s98
    %s113 = sphi 0, %s99
    %s119 = sphi 0, %s121
    %s122 = sphi 0, %s119
    %s123 = sphi 0, %s122
    %s139 = sphi 0, %s123
    %s143 = sphi 0, %s143
    %s145 = sphi 0, %s143
    %s146 = sphi 0, %s145
    %s160 = sphi 0, %s146
    %s164 = sphi 0, %s164
    %s166 = sphi 0, %s164
    %s167 = sphi 0, %s166
    %s181 = sphi 0, %s167
    %s187 = sphi 0, %s189
    %s190 = sphi 0, %s187
    %s191 = sphi 0, %s190
    %s207 = sphi 0, %s191
    %s213 = sphi 0, %s215
    %s216 = sphi 0, %s213
    %s217 = sphi 0, %s216
    %s233 = sphi 0, %s217
    %s239 = sphi 0, %s241
    %s242 = sphi 0, %s239
    %s243 = sphi 0, %s242
    %s259 = sphi 0, %s243
    %s265 = sphi 0, %s267
    %s268 = sphi 0, %s265
    %s269 = sphi 0, %s268
    %s285 = sphi 0, %s269
    %s289 = sphi 0, %s289
    %s291 = sphi 0, %s289
    %s292 = sphi 0, %s291
    %s306 = sphi 0, %s292
    %s310 = sphi 0, %s310
    %s312 = sphi 0, %s310
    %s313 = sphi 0, %s312
    %s327 = sphi 0, %s313
    %s331 = sphi 0, %s331
    %s333 = sphi 0, %s331
    %s334 = sphi 0, %s333
    %s348 = sphi 0, %s334
    %s354 = sphi 0, %s356
    %s357 = sphi 0, %s354
    %s358 = sphi 0, %s357
    %s374 = sphi 0, %s358
    %s380 = sphi 0, %s382
    %s383 = sphi 0, %s380
    %s384 = sphi 0, %s383
    %s400 = sphi 0, %s384
    %s406 = sphi 0, %s408
    %s409 = sphi 0, %s406
    %s410 = sphi 0, %s409
    %s426 = sphi 0, %s410
  $region4: #{naive_forward.1} parent=0 // loop_header_branch
    %25 = sbr.rel (%p23) target = $region8
  $region5: #{naive_forward.1} parent=0 // loop_body
    %s27 = ssub.s32 %s22, 1
    %s28 = ssub.s32 %s22, 2
    %s35 = sadd.s32 1, %s30
    %p36 = scmp.ge.s32.totalorder %s35, 2
    %s37 = scalar_select %p36, 0, %s35
    %s38 = sadd.s32 1, %s29
    %s39 = scalar_select %p36, %s38, %s29
    %p40 = scmp.ge.s32.totalorder %s39, 1
    %s41 = scalar_select %p40, 0, %s39
    %s42 = ssub.s32 %s29, %s41
    %s43 = ssub.s32 %s30, %s37
    %s44 = sor.u32 %s42, %s43
    %p45 = scmp.eq.s32.totalorder %s44, 0
    %s47 = sadd.s32 %s46, 1
    %s48 = scalar_select %p45, %s46, %s47
    %p51 = pneg %p45
    %p52 = scmp.eq.s32.totalorder %s22, 1
    %p53 = por %p51, %p52
    %p54 = scmp.ne.s32.totalorder %s46, %s49
    %p55 = scmp.eq.s32.totalorder %s22, 0
    %p56 = por %p54, %p55
    %p57 = scmp.ne.s32.totalorder %s46, %s49
    %p58 = scmp.eq.s32.totalorder %s27, 1
    %p59 = por %p57, %p58
    %p60 = scmp.ne.s32.totalorder %s49, %s50
    %p61 = scmp.eq.s32.totalorder %s27, 0
    %p62 = por %p60, %p61
    %p63 = scmp.ne.s32.totalorder %s49, %s50
    %p64 = scmp.eq.s32.totalorder %s28, 1
    %p65 = por %p63, %p64
    %p67 = scmp.ne.s32.totalorder %s50, %s66
    %p68 = scmp.eq.s32.totalorder %s28, 0
    %p69 = por %p67, %p68
    %s70 = ssub.s32 %s30, %s37
    %p71 = scmp.eq.s32.totalorder %s70, 0
    %s73 = sadd.s32 %s72, 1
    %s74 = scalar_select %p71, %s72, %s73
    %p77 = pneg %p71
    %p78 = scmp.eq.s32.totalorder %s22, 1
    %p79 = por %p77, %p78
    %p80 = scmp.ne.s32.totalorder %s72, %s75
    %p81 = scmp.eq.s32.totalorder %s22, 0
    %p82 = por %p80, %p81
    %p83 = scmp.ne.s32.totalorder %s72, %s75
    %p84 = scmp.eq.s32.totalorder %s27, 1
    %p85 = por %p83, %p84
    %p86 = scmp.ne.s32.totalorder %s75, %s76
    %p87 = scmp.eq.s32.totalorder %s27, 0
    %p88 = por %p86, %p87
    %p89 = scmp.ne.s32.totalorder %s75, %s76
    %p90 = scmp.eq.s32.totalorder %s28, 1
    %p91 = por %p89, %p90
    %p93 = scmp.ne.s32.totalorder %s76, %s92
    %p94 = scmp.eq.s32.totalorder %s28, 0
    %p95 = por %p93, %p94
    %s97 = sadd.s32 %s96, 1
    %p100 = scmp.eq.s32.totalorder %s22, 1
    %p101 = scmp.ne.s32.totalorder %s96, %s98
    %p102 = scmp.eq.s32.totalorder %s22, 0
    %p103 = por %p101, %p102
    %p104 = scmp.ne.s32.totalorder %s96, %s98
    %p105 = scmp.eq.s32.totalorder %s27, 1
    %p106 = por %p104, %p105
    %p107 = scmp.ne.s32.totalorder %s98, %s99
    %p108 = scmp.eq.s32.totalorder %s27, 0
    %p109 = por %p107, %p108
    %p110 = scmp.ne.s32.totalorder %s98, %s99
    %p111 = scmp.eq.s32.totalorder %s28, 1
    %p112 = por %p110, %p111
    %p114 = scmp.ne.s32.totalorder %s99, %s113
    %p115 = scmp.eq.s32.totalorder %s28, 0
    %p116 = por %p114, %p115
    %s117 = ssub.s32 %s29, %s41
    %p118 = scmp.eq.s32.totalorder %s117, 0
    %s120 = sadd.s32 %s119, 1
    %s121 = scalar_select %p118, %s119, %s120
    %p124 = pneg %p118
    %p125 = scmp.eq.s32.totalorder %s22, 1
    %p126 = por %p124, %p125
    %p127 = scmp.ne.s32.totalorder %s119, %s122
    %p128 = scmp.eq.s32.totalorder %s22, 0
    %p129 = por %p127, %p128
    %p130 = scmp.ne.s32.totalorder %s119, %s122
    %p131 = scmp.eq.s32.totalorder %s27, 1
    %p132 = por %p130, %p131
    %p133 = scmp.ne.s32.totalorder %s122, %s123
    %p134 = scmp.eq.s32.totalorder %s27, 0
    %p135 = por %p133, %p134
    %p136 = scmp.ne.s32.totalorder %s122, %s123
    %p137 = scmp.eq.s32.totalorder %s28, 1
    %p138 = por %p136, %p137
    %p140 = scmp.ne.s32.totalorder %s123, %s139
    %p141 = scmp.eq.s32.totalorder %s28, 0
    %p142 = por %p140, %p141
    %s144 = sadd.s32 %s143, 1
    %p147 = scmp.eq.s32.totalorder %s22, 1
    %p148 = scmp.ne.s32.totalorder %s143, %s145
    %p149 = scmp.eq.s32.totalorder %s22, 0
    %p150 = por %p148, %p149
    %p151 = scmp.ne.s32.totalorder %s143, %s145
    %p152 = scmp.eq.s32.totalorder %s27, 1
    %p153 = por %p151, %p152
    %p154 = scmp.ne.s32.totalorder %s145, %s146
    %p155 = scmp.eq.s32.totalorder %s27, 0
    %p156 = por %p154, %p155
    %p157 = scmp.ne.s32.totalorder %s145, %s146
    %p158 = scmp.eq.s32.totalorder %s28, 1
    %p159 = por %p157, %p158
    %p161 = scmp.ne.s32.totalorder %s146, %s160
    %p162 = scmp.eq.s32.totalorder %s28, 0
    %p163 = por %p161, %p162
    %s165 = sadd.s32 %s164, 1
    %p168 = scmp.eq.s32.totalorder %s22, 1
    %p169 = scmp.ne.s32.totalorder %s164, %s166
    %p170 = scmp.eq.s32.totalorder %s22, 0
    %p171 = por %p169, %p170
    %p172 = scmp.ne.s32.totalorder %s164, %s166
    %p173 = scmp.eq.s32.totalorder %s27, 1
    %p174 = por %p172, %p173
    %p175 = scmp.ne.s32.totalorder %s166, %s167
    %p176 = scmp.eq.s32.totalorder %s27, 0
    %p177 = por %p175, %p176
    %p178 = scmp.ne.s32.totalorder %s166, %s167
    %p179 = scmp.eq.s32.totalorder %s28, 1
    %p180 = por %p178, %p179
    %p182 = scmp.ne.s32.totalorder %s167, %s181
    %p183 = scmp.eq.s32.totalorder %s28, 0
    %p184 = por %p182, %p183
    %s185 = ssub.s32 %s29, %s41
    %p186 = scmp.eq.s32.totalorder %s185, 0
    %s188 = sadd.s32 %s187, 1
    %s189 = scalar_select %p186, %s187, %s188
    %p192 = pneg %p186
    %p193 = scmp.eq.s32.totalorder %s22, 1
    %p194 = por %p192, %p193
    %p195 = scmp.ne.s32.totalorder %s187, %s190
    %p196 = scmp.eq.s32.totalorder %s22, 0
    %p197 = por %p195, %p196
    %p198 = scmp.ne.s32.totalorder %s187, %s190
    %p199 = scmp.eq.s32.totalorder %s27, 1
    %p200 = por %p198, %p199
    %p201 = scmp.ne.s32.totalorder %s190, %s191
    %p202 = scmp.eq.s32.totalorder %s27, 0
    %p203 = por %p201, %p202
    %p204 = scmp.ne.s32.totalorder %s190, %s191
    %p205 = scmp.eq.s32.totalorder %s28, 1
    %p206 = por %p204, %p205
    %p208 = scmp.ne.s32.totalorder %s191, %s207
    %p209 = scmp.eq.s32.totalorder %s28, 0
    %p210 = por %p208, %p209
    %s211 = ssub.s32 %s29, %s41
    %p212 = scmp.eq.s32.totalorder %s211, 0
    %s214 = sadd.s32 %s213, 1
    %s215 = scalar_select %p212, %s213, %s214
    %p218 = pneg %p212
    %p219 = scmp.eq.s32.totalorder %s22, 1
    %p220 = por %p218, %p219
    %p221 = scmp.ne.s32.totalorder %s213, %s216
    %p222 = scmp.eq.s32.totalorder %s22, 0
    %p223 = por %p221, %p222
    %p224 = scmp.ne.s32.totalorder %s213, %s216
    %p225 = scmp.eq.s32.totalorder %s27, 1
    %p226 = por %p224, %p225
    %p227 = scmp.ne.s32.totalorder %s216, %s217
    %p228 = scmp.eq.s32.totalorder %s27, 0
    %p229 = por %p227, %p228
    %p230 = scmp.ne.s32.totalorder %s216, %s217
    %p231 = scmp.eq.s32.totalorder %s28, 1
    %p232 = por %p230, %p231
    %p234 = scmp.ne.s32.totalorder %s217, %s233
    %p235 = scmp.eq.s32.totalorder %s28, 0
    %p236 = por %p234, %p235
    %s237 = ssub.s32 %s29, %s41
    %p238 = scmp.eq.s32.totalorder %s237, 0
    %s240 = sadd.s32 %s239, 1
    %s241 = scalar_select %p238, %s239, %s240
    %p244 = pneg %p238
    %p245 = scmp.eq.s32.totalorder %s22, 1
    %p246 = por %p244, %p245
    %p247 = scmp.ne.s32.totalorder %s239, %s242
    %p248 = scmp.eq.s32.totalorder %s22, 0
    %p249 = por %p247, %p248
    %p250 = scmp.ne.s32.totalorder %s239, %s242
    %p251 = scmp.eq.s32.totalorder %s27, 1
    %p252 = por %p250, %p251
    %p253 = scmp.ne.s32.totalorder %s242, %s243
    %p254 = scmp.eq.s32.totalorder %s27, 0
    %p255 = por %p253, %p254
    %p256 = scmp.ne.s32.totalorder %s242, %s243
    %p257 = scmp.eq.s32.totalorder %s28, 1
    %p258 = por %p256, %p257
    %p260 = scmp.ne.s32.totalorder %s243, %s259
    %p261 = scmp.eq.s32.totalorder %s28, 0
    %p262 = por %p260, %p261
    %s263 = ssub.s32 %s29, %s41
    %p264 = scmp.eq.s32.totalorder %s263, 0
    %s266 = sadd.s32 %s265, 1
    %s267 = scalar_select %p264, %s265, %s266
    %p270 = pneg %p264
    %p271 = scmp.eq.s32.totalorder %s22, 1
    %p272 = por %p270, %p271
    %p273 = scmp.ne.s32.totalorder %s265, %s268
    %p274 = scmp.eq.s32.totalorder %s22, 0
    %p275 = por %p273, %p274
    %p276 = scmp.ne.s32.totalorder %s265, %s268
    %p277 = scmp.eq.s32.totalorder %s27, 1
    %p278 = por %p276, %p277
    %p279 = scmp.ne.s32.totalorder %s268, %s269
    %p280 = scmp.eq.s32.totalorder %s27, 0
    %p281 = por %p279, %p280
    %p282 = scmp.ne.s32.totalorder %s268, %s269
    %p283 = scmp.eq.s32.totalorder %s28, 1
    %p284 = por %p282, %p283
    %p286 = scmp.ne.s32.totalorder %s269, %s285
    %p287 = scmp.eq.s32.totalorder %s28, 0
    %p288 = por %p286, %p287
    %s290 = sadd.s32 %s289, 1
    %p293 = scmp.eq.s32.totalorder %s22, 1
    %p294 = scmp.ne.s32.totalorder %s289, %s291
    %p295 = scmp.eq.s32.totalorder %s22, 0
    %p296 = por %p294, %p295
    %p297 = scmp.ne.s32.totalorder %s289, %s291
    %p298 = scmp.eq.s32.totalorder %s27, 1
    %p299 = por %p297, %p298
    %p300 = scmp.ne.s32.totalorder %s291, %s292
    %p301 = scmp.eq.s32.totalorder %s27, 0
    %p302 = por %p300, %p301
    %p303 = scmp.ne.s32.totalorder %s291, %s292
    %p304 = scmp.eq.s32.totalorder %s28, 1
    %p305 = por %p303, %p304
    %p307 = scmp.ne.s32.totalorder %s292, %s306
    %p308 = scmp.eq.s32.totalorder %s28, 0
    %p309 = por %p307, %p308
    %s311 = sadd.s32 %s310, 1
    %p314 = scmp.eq.s32.totalorder %s22, 1
    %p315 = scmp.ne.s32.totalorder %s310, %s312
    %p316 = scmp.eq.s32.totalorder %s22, 0
    %p317 = por %p315, %p316
    %p318 = scmp.ne.s32.totalorder %s310, %s312
    %p319 = scmp.eq.s32.totalorder %s27, 1
    %p320 = por %p318, %p319
    %p321 = scmp.ne.s32.totalorder %s312, %s313
    %p322 = scmp.eq.s32.totalorder %s27, 0
    %p323 = por %p321, %p322
    %p324 = scmp.ne.s32.totalorder %s312, %s313
    %p325 = scmp.eq.s32.totalorder %s28, 1
    %p326 = por %p324, %p325
    %p328 = scmp.ne.s32.totalorder %s313, %s327
    %p329 = scmp.eq.s32.totalorder %s28, 0
    %p330 = por %p328, %p329
    %s332 = sadd.s32 %s331, 1
    %p335 = scmp.eq.s32.totalorder %s22, 1
    %p336 = scmp.ne.s32.totalorder %s331, %s333
    %p337 = scmp.eq.s32.totalorder %s22, 0
    %p338 = por %p336, %p337
    %p339 = scmp.ne.s32.totalorder %s331, %s333
    %p340 = scmp.eq.s32.totalorder %s27, 1
    %p341 = por %p339, %p340
    %p342 = scmp.ne.s32.totalorder %s333, %s334
    %p343 = scmp.eq.s32.totalorder %s27, 0
    %p344 = por %p342, %p343
    %p345 = scmp.ne.s32.totalorder %s333, %s334
    %p346 = scmp.eq.s32.totalorder %s28, 1
    %p347 = por %p345, %p346
    %p349 = scmp.ne.s32.totalorder %s334, %s348
    %p350 = scmp.eq.s32.totalorder %s28, 0
    %p351 = por %p349, %p350
    %s352 = ssub.s32 %s29, %s41
    %p353 = scmp.eq.s32.totalorder %s352, 0
    %s355 = sadd.s32 %s354, 1
    %s356 = scalar_select %p353, %s354, %s355
    %p359 = pneg %p353
    %p360 = scmp.eq.s32.totalorder %s22, 1
    %p361 = por %p359, %p360
    %p362 = scmp.ne.s32.totalorder %s354, %s357
    %p363 = scmp.eq.s32.totalorder %s22, 0
    %p364 = por %p362, %p363
    %p365 = scmp.ne.s32.totalorder %s354, %s357
    %p366 = scmp.eq.s32.totalorder %s27, 1
    %p367 = por %p365, %p366
    %p368 = scmp.ne.s32.totalorder %s357, %s358
    %p369 = scmp.eq.s32.totalorder %s27, 0
    %p370 = por %p368, %p369
    %p371 = scmp.ne.s32.totalorder %s357, %s358
    %p372 = scmp.eq.s32.totalorder %s28, 1
    %p373 = por %p371, %p372
    %p375 = scmp.ne.s32.totalorder %s358, %s374
    %p376 = scmp.eq.s32.totalorder %s28, 0
    %p377 = por %p375, %p376
    %s378 = ssub.s32 %s29, %s41
    %p379 = scmp.eq.s32.totalorder %s378, 0
    %s381 = sadd.s32 %s380, 1
    %s382 = scalar_select %p379, %s380, %s381
    %p385 = pneg %p379
    %p386 = scmp.eq.s32.totalorder %s22, 1
    %p387 = por %p385, %p386
    %p388 = scmp.ne.s32.totalorder %s380, %s383
    %p389 = scmp.eq.s32.totalorder %s22, 0
    %p390 = por %p388, %p389
    %p391 = scmp.ne.s32.totalorder %s380, %s383
    %p392 = scmp.eq.s32.totalorder %s27, 1
    %p393 = por %p391, %p392
    %p394 = scmp.ne.s32.totalorder %s383, %s384
    %p395 = scmp.eq.s32.totalorder %s27, 0
    %p396 = por %p394, %p395
    %p397 = scmp.ne.s32.totalorder %s383, %s384
    %p398 = scmp.eq.s32.totalorder %s28, 1
    %p399 = por %p397, %p398
    %p401 = scmp.ne.s32.totalorder %s384, %s400
    %p402 = scmp.eq.s32.totalorder %s28, 0
    %p403 = por %p401, %p402
    %s404 = ssub.s32 %s29, %s41
    %p405 = scmp.eq.s32.totalorder %s404, 0
    %s407 = sadd.s32 %s406, 1
    %s408 = scalar_select %p405, %s406, %s407
    %p411 = pneg %p405
    %p412 = scmp.eq.s32.totalorder %s22, 1
    %p413 = por %p411, %p412
    %p414 = scmp.ne.s32.totalorder %s406, %s409
    %p415 = scmp.eq.s32.totalorder %s22, 0
    %p416 = por %p414, %p415
    %p417 = scmp.ne.s32.totalorder %s406, %s409
    %p418 = scmp.eq.s32.totalorder %s27, 1
    %p419 = por %p417, %p418
    %p420 = scmp.ne.s32.totalorder %s409, %s410
    %p421 = scmp.eq.s32.totalorder %s27, 0
    %p422 = por %p420, %p421
    %p423 = scmp.ne.s32.totalorder %s409, %s410
    %p424 = scmp.eq.s32.totalorder %s28, 1
    %p425 = por %p423, %p424
    %p427 = scmp.ne.s32.totalorder %s410, %s426
    %p428 = scmp.eq.s32.totalorder %s28, 0
    %p429 = por %p427, %p428
    %p430 = scmp.le.s32.totalorder 1, %s22
    %p431 = scmp.lt.s32.totalorder %s22, 3
    %p432 = pnand %p430, %p431
    %p433 = pneg %p432
    // Predicated region
    $region9: #{naive_forward.1} parent=5 // pred_check
      _
    $region10: #{naive_forward.1} parent=5 // pred_check_branch
      %435 = sbr.rel (%p432) target = $region12
    $region11: #{naive_forward.1} parent=5 // pred_region
      %s436 = ssub.s32 %s22, 1
      // Predicated region
      $region13: #{naive_forward.1} parent=11 // pred_check
        %p437 = pneg %p109
      $region14: #{naive_forward.1} parent=11 // pred_check_branch
        %439 = sbr.rel (%p437) target = $region16
      $region15: #{naive_forward.1} parent=11 // pred_region
        _
      $region16: #{naive_forward.1} parent=11 // pred_fallthru
        _
      // Predicated region
      $region17: #{naive_forward.1} parent=11 // pred_check
        %p440 = pneg %p135
      $region18: #{naive_forward.1} parent=11 // pred_check_branch
        %442 = sbr.rel (%p440) target = $region20
      $region19: #{naive_forward.1} parent=11 // pred_region
        %p443 = scmp.lt.s32.totalorder %s31, 0
        %s444 = scalar_select %p443, %s31, 0
        %s445 = smul.addr %s444, 4
        %s446 = scalar_lea.vmem %s3, %s445
      $region20: #{naive_forward.1} parent=11 // pred_fallthru
        _
      // Predicated region
      $region21: #{naive_forward.1} parent=11 // pred_check
        %p447 = pneg %p156
      $region22: #{naive_forward.1} parent=11 // pred_check_branch
        %449 = sbr.rel (%p447) target = $region24
      $region23: #{naive_forward.1} parent=11 // pred_region
        _
      $region24: #{naive_forward.1} parent=11 // pred_fallthru
        _
      // Predicated region
      $region25: #{naive_forward.1} parent=11 // pred_check
        %p450 = pneg %p177
      $region26: #{naive_forward.1} parent=11 // pred_check_branch
        %452 = sbr.rel (%p450) target = $region28
      $region27: #{naive_forward.1} parent=11 // pred_region
        _
      $region28: #{naive_forward.1} parent=11 // pred_fallthru
        _
      // Predicated region
      $region29: #{naive_forward.1} parent=11 // pred_check
        %p453 = pneg %p203
      $region30: #{naive_forward.1} parent=11 // pred_check_branch
        %455 = sbr.rel (%p453) target = $region32
      $region31: #{naive_forward.1} parent=11 // pred_region
        %p456 = scmp.lt.s32.totalorder %s31, 0
        %s457 = scalar_select %p456, %s31, 0
        %s458 = smul.addr %s457, 4
        %s459 = scalar_lea.vmem %s6, %s458
      $region32: #{naive_forward.1} parent=11 // pred_fallthru
        _
      // Predicated region
      $region33: #{naive_forward.1} parent=11 // pred_check
        %p460 = pneg %p229
      $region34: #{naive_forward.1} parent=11 // pred_check_branch
        %462 = sbr.rel (%p460) target = $region36
      $region35: #{naive_forward.1} parent=11 // pred_region
        %p463 = scmp.lt.s32.totalorder %s31, 0
        %s464 = scalar_select %p463, %s31, 0
        %s465 = smul.addr %s464, 4
        %s466 = scalar_lea.vmem %s7, %s465
      $region36: #{naive_forward.1} parent=11 // pred_fallthru
        _
      // Predicated region
      $region37: #{naive_forward.1} parent=11 // pred_check
        %p467 = pneg %p255
      $region38: #{naive_forward.1} parent=11 // pred_check_branch
        %469 = sbr.rel (%p467) target = $region40
      $region39: #{naive_forward.1} parent=11 // pred_region
        %p470 = scmp.lt.s32.totalorder %s31, 0
        %s471 = scalar_select %p470, %s31, 0
        %s472 = smul.addr %s471, 4
        %s473 = scalar_lea.vmem %s8, %s472
      $region40: #{naive_forward.1} parent=11 // pred_fallthru
        _
      // Predicated region
      $region41: #{naive_forward.1} parent=11 // pred_check
        %p474 = pneg %p281
      $region42: #{naive_forward.1} parent=11 // pred_check_branch
        %476 = sbr.rel (%p474) target = $region44
      $region43: #{naive_forward.1} parent=11 // pred_region
        %p477 = scmp.lt.s32.totalorder %s31, 0
        %s478 = scalar_select %p477, %s31, 0
        %s479 = smul.addr %s478, 4
        %s480 = scalar_lea.vmem %s9, %s479
      $region44: #{naive_forward.1} parent=11 // pred_fallthru
        _
      // Predicated region
      $region45: #{naive_forward.1} parent=11 // pred_check
        %p481 = pneg %p302
      $region46: #{naive_forward.1} parent=11 // pred_check_branch
        %483 = sbr.rel (%p481) target = $region48
      $region47: #{naive_forward.1} parent=11 // pred_region
        _
      $region48: #{naive_forward.1} parent=11 // pred_fallthru
        _
      // Predicated region
      $region49: #{naive_forward.1} parent=11 // pred_check
        %p484 = pneg %p323
      $region50: #{naive_forward.1} parent=11 // pred_check_branch
        %486 = sbr.rel (%p484) target = $region52
      $region51: #{naive_forward.1} parent=11 // pred_region
        _
      $region52: #{naive_forward.1} parent=11 // pred_fallthru
        _
      // Predicated region
      $region53: #{naive_forward.1} parent=11 // pred_check
        %p487 = pneg %p344
      $region54: #{naive_forward.1} parent=11 // pred_check_branch
        %489 = sbr.rel (%p487) target = $region56
      $region55: #{naive_forward.1} parent=11 // pred_region
        _
      $region56: #{naive_forward.1} parent=11 // pred_fallthru
        _
      // Predicated region
      $region57: #{naive_forward.1} parent=11 // pred_check
        %p490 = pneg %p370
      $region58: #{naive_forward.1} parent=11 // pred_check_branch
        %492 = sbr.rel (%p490) target = $region60
      $region59: #{naive_forward.1} parent=11 // pred_region
        %p493 = scmp.lt.s32.totalorder %s31, 0
        %s494 = scalar_select %p493, %s31, 0
        %s495 = smul.addr %s494, 8
        %s496 = scalar_lea.vmem %s13, %s495
      $region60: #{naive_forward.1} parent=11 // pred_fallthru
        _
    $region12: #{naive_forward.1} parent=5 // pred_fallthru
      _
    %p497 = scmp.lt.s32.totalorder %s22, 2
    // Predicated region
    $region61: #{naive_forward.1} parent=5 // pred_check
      %p498 = pneg %p497
    $region62: #{naive_forward.1} parent=5 // pred_check_branch
      %500 = sbr.rel (%p498) target = $region64
    $region63: #{naive_forward.1} parent=5 // pred_region
      // Predicated region
      $region65: #{naive_forward.1} parent=63 // pred_check
        %p501 = pneg %p56
      $region66: #{naive_forward.1} parent=63 // pred_check_branch
        %503 = sbr.rel (%p501) target = $region68
      $region67: #{naive_forward.1} parent=63 // pred_region
        %s504 = smul.u32 4, %s30
        %p505 = scmp.lt.s32.totalorder %s29, 0
        %s506 = scalar_select %p505, %s29, 0
        %p507 = scmp.lt.s32.totalorder %s504, 7
        %s508 = scalar_select %p507, %s504, 7
        %s509 = smul.addr %s506, 8
        %s510 = sadd.s32 %s508, %s509
        %s511 = smul.addr %s510, 4
        %s512 = scalar_lea.vmem %s0, %s511
        %s513 = smul.u32 4, %s30
      $region68: #{naive_forward.1} parent=63 // pred_fallthru
        _
      // Predicated region
      $region69: #{naive_forward.1} parent=63 // pred_check
        %p514 = pneg %p82
      $region70: #{naive_forward.1} parent=63 // pred_check_branch
        %516 = sbr.rel (%p514) target = $region72
      $region71: #{naive_forward.1} parent=63 // pred_region
        %s517 = smul.u32 64, %s30
        %p518 = scmp.lt.s32.totalorder %s517, 127
        %s519 = scalar_select %p518, %s517, 127
        %s520 = smul.addr %s519, 4
        %s521 = scalar_lea.vmem %s1, %s520
        %s522 = smul.u32 64, %s30
      $region72: #{naive_forward.1} parent=63 // pred_fallthru
        _
    $region64: #{naive_forward.1} parent=5 // pred_fallthru
      _
    %p523 = scmp.le.s32.totalorder 1, %s22
    %p524 = scmp.lt.s32.totalorder %s22, 3
    %p525 = pnand %p523, %p524
    %p526 = pneg %p525
    // Predicated region
    $region73: #{naive_forward.1} parent=5 // pred_check
      _
    $region74: #{naive_forward.1} parent=5 // pred_check_branch
      %528 = sbr.rel (%p525) target = $region76
    $region75: #{naive_forward.1} parent=5 // pred_region
      %s529 = ssub.s32 %s22, 1
      %s530 = smul.u32 4, %s32
      %p531 = scmp.lt.s32.totalorder %s31, 0
      %s532 = scalar_select %p531, %s31, 0
      %p533 = scmp.lt.s32.totalorder %s530, 7
      %s534 = scalar_select %p533, %s530, 7
      %s535 = smul.addr %s532, 8
      %s536 = sadd.s32 %s534, %s535
      %s537 = smul.addr %s536, 4
      %s538 = scalar_lea.vmem %s0, %s537
      %p539 = pneg %p62
      %p540 = pneg %p59
      %s541 = smul.u32 64, %s32
      %p542 = scmp.lt.s32.totalorder %s541, 127
      %s543 = scalar_select %p542, %s541, 127
      %s544 = smul.addr %s543, 4
      %s545 = scalar_lea.vmem %s1, %s544
      %p546 = pneg %p88
      %p547 = pneg %p85
      %p548 = pneg %p109
      %p549 = pneg %p106
      %p550 = scmp.lt.s32.totalorder %s31, 0
      %s551 = scalar_select %p550, %s31, 0
      %s552 = smul.addr %s551, 4
      %s553 = scalar_lea.vmem %s3, %s552
      %p554 = pneg %p135
      %p555 = pneg %p132
      %p556 = pneg %p156
      %p557 = pneg %p153
      %p558 = pneg %p177
      %p559 = pneg %p174
      %p560 = scmp.lt.s32.totalorder %s31, 0
      %s561 = scalar_select %p560, %s31, 0
      %s562 = smul.addr %s561, 4
      %s563 = scalar_lea.vmem %s6, %s562
      %p564 = pneg %p203
      %p565 = pneg %p200
      %p566 = scmp.lt.s32.totalorder %s31, 0
      %s567 = scalar_select %p566, %s31, 0
      %s568 = smul.addr %s567, 4
      %s569 = scalar_lea.vmem %s7, %s568
      %p570 = pneg %p229
      %p571 = pneg %p226
      %p572 = scmp.lt.s32.totalorder %s31, 0
      %s573 = scalar_select %p572, %s31, 0
      %s574 = smul.addr %s573, 4
      %s575 = scalar_lea.vmem %s8, %s574
      %p576 = pneg %p255
      %p577 = pneg %p252
      %p578 = scmp.lt.s32.totalorder %s31, 0
      %s579 = scalar_select %p578, %s31, 0
      %s580 = smul.addr %s579, 4
      %s581 = scalar_lea.vmem %s9, %s580
      %p582 = pneg %p281
      %p583 = pneg %p278
      %p584 = pneg %p302
      %p585 = pneg %p299
      %p586 = pneg %p323
      %p587 = pneg %p320
      %p588 = pneg %p344
      %p589 = pneg %p341
      %p590 = scmp.lt.s32.totalorder %s31, 0
      %s591 = scalar_select %p590, %s31, 0
      %s592 = smul.addr %s591, 8
      %s593 = scalar_lea.vmem %s13, %s592
      %p594 = pneg %p370
      %p595 = pneg %p367
      %p596 = pneg %p396
      %p597 = pneg %p393
      %p598 = scmp.lt.s32.totalorder %s31, 0
      %s599 = scalar_select %p598, %s31, 0
      %s600 = smul.addr %s599, 4
      %s601 = scalar_lea.vmem %s14, %s600
      %p602 = pneg %p422
      %p603 = pneg %p419
      %p604 = scmp.lt.s32.totalorder %s31, 0
      %s605 = scalar_select %p604, %s31, 0
      %s606 = smul.addr %s605, 8
      %s607 = scalar_lea.vmem %s15, %s606
      %s608 = smul.u32 4, %s32
      %p609 = scmp.lt.s32.totalorder %s31, 0
      %s610 = scalar_select %p609, %s31, 0
      %p611 = scmp.lt.s32.totalorder %s608, 7
      %s612 = scalar_select %p611, %s608, 7
      %s613 = smul.addr %s610, 8
      %s614 = sadd.s32 %s612, %s613
      %s615 = smul.addr %s614, 4
      %s616 = scalar_lea.vmem %s0, %s615
      %s617 = smul.u32 4, %s32
      %s618 = smul.u32 64, %s32
      %p619 = scmp.lt.s32.totalorder %s618, 127
      %s620 = scalar_select %p619, %s618, 127
      %s621 = smul.addr %s620, 4
      %s622 = scalar_lea.vmem %s1, %s621
      %s623 = smul.u32 64, %s32
      %p624 = scmp.lt.s32.totalorder %s31, 0
      %s625 = scalar_select %p624, %s31, 0
      %s626 = smul.addr %s625, 4
      %s627 = scalar_lea.vmem %s3, %s626
      %p628 = scmp.lt.s32.totalorder %s31, 0
      %s629 = scalar_select %p628, %s31, 0
      %s630 = smul.addr %s629, 4
      %s631 = scalar_lea.vmem %s6, %s630
      %p632 = scmp.lt.s32.totalorder %s31, 0
      %s633 = scalar_select %p632, %s31, 0
      %s634 = smul.addr %s633, 4
      %s635 = scalar_lea.vmem %s7, %s634
      %p636 = scmp.lt.s32.totalorder %s31, 0
      %s637 = scalar_select %p636, %s31, 0
      %s638 = smul.addr %s637, 4
      %s639 = scalar_lea.vmem %s8, %s638
      %p640 = scmp.lt.s32.totalorder %s31, 0
      %s641 = scalar_select %p640, %s31, 0
      %s642 = smul.addr %s641, 4
      %s643 = scalar_lea.vmem %s9, %s642
      %p644 = scmp.lt.s32.totalorder %s31, 0
      %s645 = scalar_select %p644, %s31, 0
      %s646 = smul.addr %s645, 8
      %s647 = scalar_lea.vmem %s13, %s646
      %p648 = scmp.lt.s32.totalorder %s31, 0
      %s649 = scalar_select %p648, %s31, 0
      %s650 = smul.addr %s649, 4
      %s651 = scalar_lea.vmem %s14, %s650
      %p652 = scmp.lt.s32.totalorder %s31, 0
      %s653 = scalar_select %p652, %s31, 0
      %s654 = smul.addr %s653, 8
      %s655 = scalar_lea.vmem %s15, %s654
      %s656 = smul.u32 %s31, 8
      %p657 = scmp.eq.s32.totalorder %s32, 0
      // Predicated region
      $region77: #{naive_forward.1} parent=75 // pred_check
        %p658 = pneg %p657
      $region78: #{naive_forward.1} parent=75 // pred_check_branch
        %660 = sbr.rel (%p658) target = $region80
      $region79: #{naive_forward.1} parent=75 // pred_region
        %661 = vst [vmem:[#allocation2] sm:$0xff] 0.0
      $region80: #{naive_forward.1} parent=75 // pred_fallthru
        _
      %v662 = vld [vmem:[#allocation2] sm:$0xff]
      %v663 = vld [vmem:[%s616] sm:$0xff]
      %v664 = vld [vmem:[%s616 + $0x8] sm:$0xff]
      %v665 = vld [vmem:[%s622] sm:$0xf]
      %v666 = vld [vmem:[%s622 + $0x4] sm:$0xf]
      %v667 = vld [vmem:[%s622 + $0x8] sm:$0xf]
      %v668 = vld [vmem:[%s622 + $0xc] sm:$0xf]
      %v669 = vld [vmem:[%s622 + $0x10] sm:$0xf]
      %v670 = vld [vmem:[%s622 + $0x14] sm:$0xf]
      %v671 = vld [vmem:[%s622 + $0x18] sm:$0xf]
      %v672 = vld [vmem:[%s622 + $0x1c] sm:$0xf]
      %v673 = vld [vmem:[%s622 + $0x20] sm:$0xf]
      %v674 = vld [vmem:[%s622 + $0x24] sm:$0xf]
      %v675 = vld [vmem:[%s622 + $0x28] sm:$0xf]
      %v676 = vld [vmem:[%s622 + $0x2c] sm:$0xf]
      %v677 = vld [vmem:[%s622 + $0x30] sm:$0xf]
      %v678 = vld [vmem:[%s622 + $0x34] sm:$0xf]
      %v679 = vld [vmem:[%s622 + $0x38] sm:$0xf]
      %v680 = vld [vmem:[%s622 + $0x3c] sm:$0xf]
      %v681 = vld [vmem:[%s622 + $0x40] sm:$0xf]
      %v682 = vld [vmem:[%s622 + $0x44] sm:$0xf]
      %v683 = vld [vmem:[%s622 + $0x48] sm:$0xf]
      %v684 = vld [vmem:[%s622 + $0x4c] sm:$0xf]
      %v685 = vld [vmem:[%s622 + $0x50] sm:$0xf]
      %v686 = vld [vmem:[%s622 + $0x54] sm:$0xf]
      %v687 = vld [vmem:[%s622 + $0x58] sm:$0xf]
      %v688 = vld [vmem:[%s622 + $0x5c] sm:$0xf]
      %v689 = vld [vmem:[%s622 + $0x60] sm:$0xf]
      %v690 = vld [vmem:[%s622 + $0x64] sm:$0xf]
      %v691 = vld [vmem:[%s622 + $0x68] sm:$0xf]
      %v692 = vld [vmem:[%s622 + $0x6c] sm:$0xf]
      %v693 = vld [vmem:[%s622 + $0x70] sm:$0xf]
      %v694 = vld [vmem:[%s622 + $0x74] sm:$0xf]
      %v695 = vld [vmem:[%s622 + $0x78] sm:$0xf]
      %v696 = vld [vmem:[%s622 + $0x7c] sm:$0xf]
      %v697 = vld [vmem:[%s622 + $0x80] sm:$0xf]
      %v698 = vld [vmem:[%s622 + $0x84] sm:$0xf]
      %v699 = vld [vmem:[%s622 + $0x88] sm:$0xf]
      %v700 = vld [vmem:[%s622 + $0x8c] sm:$0xf]
      %v701 = vld [vmem:[%s622 + $0x90] sm:$0xf]
      %v702 = vld [vmem:[%s622 + $0x94] sm:$0xf]
      %v703 = vld [vmem:[%s622 + $0x98] sm:$0xf]
      %v704 = vld [vmem:[%s622 + $0x9c] sm:$0xf]
      %v705 = vld [vmem:[%s622 + $0xa0] sm:$0xf]
      %v706 = vld [vmem:[%s622 + $0xa4] sm:$0xf]
      %v707 = vld [vmem:[%s622 + $0xa8] sm:$0xf]
      %v708 = vld [vmem:[%s622 + $0xac] sm:$0xf]
      %v709 = vld [vmem:[%s622 + $0xb0] sm:$0xf]
      %v710 = vld [vmem:[%s622 + $0xb4] sm:$0xf]
      %v711 = vld [vmem:[%s622 + $0xb8] sm:$0xf]
      %v712 = vld [vmem:[%s622 + $0xbc] sm:$0xf]
      %v713 = vld [vmem:[%s622 + $0xc0] sm:$0xf]
      %v714 = vld [vmem:[%s622 + $0xc4] sm:$0xf]
      %v715 = vld [vmem:[%s622 + $0xc8] sm:$0xf]
      %v716 = vld [vmem:[%s622 + $0xcc] sm:$0xf]
      %v717 = vld [vmem:[%s622 + $0xd0] sm:$0xf]
      %v718 = vld [vmem:[%s622 + $0xd4] sm:$0xf]
      %v719 = vld [vmem:[%s622 + $0xd8] sm:$0xf]
      %v720 = vld [vmem:[%s622 + $0xdc] sm:$0xf]
      %v721 = vld [vmem:[%s622 + $0xe0] sm:$0xf]
      %v722 = vld [vmem:[%s622 + $0xe4] sm:$0xf]
      %v723 = vld [vmem:[%s622 + $0xe8] sm:$0xf]
      %v724 = vld [vmem:[%s622 + $0xec] sm:$0xf]
      %v725 = vld [vmem:[%s622 + $0xf0] sm:$0xf]
      %v726 = vld [vmem:[%s622 + $0xf4] sm:$0xf]
      %v727 = vld [vmem:[%s622 + $0xf8] sm:$0xf]
      %v728 = vld [vmem:[%s622 + $0xfc] sm:$0xf]
      %v731 = vunpack.c.l.b16 %v663
      %v732 = vunpack.c.h.b16 %v663
      %v733 = vunpack.c.l.b16 %v664
      %v734 = vunpack.c.h.b16 %v664
      %v735 = vpack.c.b16 %v731, %v731
      %v736 = vpack.c.b16 %v732, %v732
      %v737 = vpack.c.b16 %v733, %v733
      %v738 = vpack.c.b16 %v734, %v734
      %v807 = vunpack.c.l.b16 %v665
      %v808 = vunpack.c.l.b16 %v666
      %v809 = vunpack.c.l.b16 %v667
      %v810 = vunpack.c.l.b16 %v668
      %v811 = vunpack.c.l.b16 %v669
      %v812 = vunpack.c.l.b16 %v670
      %v813 = vunpack.c.l.b16 %v671
      %v814 = vunpack.c.l.b16 %v672
      %v815 = vunpack.c.l.b16 %v673
      %v816 = vunpack.c.l.b16 %v674
      %v817 = vunpack.c.l.b16 %v675
      %v818 = vunpack.c.l.b16 %v676
      %v819 = vunpack.c.l.b16 %v677
      %v820 = vunpack.c.l.b16 %v678
      %v821 = vunpack.c.l.b16 %v679
      %v822 = vunpack.c.l.b16 %v680
      %v823 = vunpack.c.l.b16 %v681
      %v824 = vunpack.c.l.b16 %v682
      %v825 = vunpack.c.l.b16 %v683
      %v826 = vunpack.c.l.b16 %v684
      %v827 = vunpack.c.l.b16 %v685
      %v828 = vunpack.c.l.b16 %v686
      %v829 = vunpack.c.l.b16 %v687
      %v830 = vunpack.c.l.b16 %v688
      %v831 = vunpack.c.l.b16 %v689
      %v832 = vunpack.c.l.b16 %v690
      %v833 = vunpack.c.l.b16 %v691
      %v834 = vunpack.c.l.b16 %v692
      %v835 = vunpack.c.l.b16 %v693
      %v836 = vunpack.c.l.b16 %v694
      %v837 = vunpack.c.l.b16 %v695
      %v838 = vunpack.c.l.b16 %v696
      %v839 = vunpack.c.l.b16 %v697
      %v840 = vunpack.c.l.b16 %v698
      %v841 = vunpack.c.l.b16 %v699
      %v842 = vunpack.c.l.b16 %v700
      %v843 = vunpack.c.l.b16 %v701
      %v844 = vunpack.c.l.b16 %v702
      %v845 = vunpack.c.l.b16 %v703
      %v846 = vunpack.c.l.b16 %v704
      %v847 = vunpack.c.l.b16 %v705
      %v848 = vunpack.c.l.b16 %v706
      %v849 = vunpack.c.l.b16 %v707
      %v850 = vunpack.c.l.b16 %v708
      %v851 = vunpack.c.l.b16 %v709
      %v852 = vunpack.c.l.b16 %v710
      %v853 = vunpack.c.l.b16 %v711
      %v854 = vunpack.c.l.b16 %v712
      %v855 = vunpack.c.l.b16 %v713
      %v856 = vunpack.c.l.b16 %v714
      %v857 = vunpack.c.l.b16 %v715
      %v858 = vunpack.c.l.b16 %v716
      %v859 = vunpack.c.l.b16 %v717
      %v860 = vunpack.c.l.b16 %v718
      %v861 = vunpack.c.l.b16 %v719
      %v862 = vunpack.c.l.b16 %v720
      %v863 = vunpack.c.l.b16 %v721
      %v864 = vunpack.c.l.b16 %v722
      %v865 = vunpack.c.l.b16 %v723
      %v866 = vunpack.c.l.b16 %v724
      %v867 = vunpack.c.l.b16 %v725
      %v868 = vunpack.c.l.b16 %v726
      %v869 = vunpack.c.l.b16 %v727
      %v870 = vunpack.c.l.b16 %v728
      %v871 = vpack.c.b16 %v808, %v807
      %v872 = vpack.c.b16 %v810, %v809
      %v873 = vpack.c.b16 %v812, %v811
      %v874 = vpack.c.b16 %v814, %v813
      %v875 = vpack.c.b16 %v816, %v815
      %v876 = vpack.c.b16 %v818, %v817
      %v877 = vpack.c.b16 %v820, %v819
      %v878 = vpack.c.b16 %v822, %v821
      %v879 = vpack.c.b16 %v824, %v823
      %v880 = vpack.c.b16 %v826, %v825
      %v881 = vpack.c.b16 %v828, %v827
      %v882 = vpack.c.b16 %v830, %v829
      %v883 = vpack.c.b16 %v832, %v831
      %v884 = vpack.c.b16 %v834, %v833
      %v885 = vpack.c.b16 %v836, %v835
      %v886 = vpack.c.b16 %v838, %v837
      %v887 = vpack.c.b16 %v840, %v839
      %v888 = vpack.c.b16 %v842, %v841
      %v889 = vpack.c.b16 %v844, %v843
      %v890 = vpack.c.b16 %v846, %v845
      %v891 = vpack.c.b16 %v848, %v847
      %v892 = vpack.c.b16 %v850, %v849
      %v893 = vpack.c.b16 %v852, %v851
      %v894 = vpack.c.b16 %v854, %v853
      %v895 = vpack.c.b16 %v856, %v855
      %v896 = vpack.c.b16 %v858, %v857
      %v897 = vpack.c.b16 %v860, %v859
      %v898 = vpack.c.b16 %v862, %v861
      %v899 = vpack.c.b16 %v864, %v863
      %v900 = vpack.c.b16 %v866, %v865
      %v901 = vpack.c.b16 %v868, %v867
      %v902 = vpack.c.b16 %v870, %v869
      %935 = vmatpush.bf16.msra.mxu0 %v878
      %936 = vmatpush.bf16.msra.mxu0 %v877
      %937 = vmatpush.bf16.msra.mxu0 %v876
      %938 = vmatpush.bf16.msra.mxu0 %v875
      %939 = vmatpush.bf16.msra.mxu0 %v874
      %940 = vmatpush.bf16.msra.mxu0 %v873
      %941 = vmatpush.bf16.msra.mxu0 %v872
      %942 = vmatpush.bf16.msra.mxu0 %v871
      %943 = vmatmul.bf16.gmra.mxu0 %v735
      %v944 = vpop.f32.mrf.mxu0
      %v945 = vadd.f32 0.0, %v944
      %v946 = vpop.f32.mrf.mxu0
      %947 = vdwg.mxu0
      %948 = vmatpush.bf16.msra.mxu0 %v886
      %949 = vmatpush.bf16.msra.mxu0 %v885
      %950 = vmatpush.bf16.msra.mxu0 %v884
      %951 = vmatpush.bf16.msra.mxu0 %v883
      %952 = vmatpush.bf16.msra.mxu0 %v882
      %953 = vmatpush.bf16.msra.mxu0 %v881
      %954 = vmatpush.bf16.msra.mxu0 %v880
      %955 = vmatpush.bf16.msra.mxu0 %v879
      %956 = vmatmul.bf16.gmra.mxu0 %v736
      %v957 = vpop.f32.mrf.mxu0
      %v958 = vadd.f32 %v945, %v957
      %v959 = vpop.f32.mrf.mxu0
      %960 = vdwg.mxu0
      %961 = vmatpush.bf16.msra.mxu0 %v894
      %962 = vmatpush.bf16.msra.mxu0 %v893
      %963 = vmatpush.bf16.msra.mxu0 %v892
      %964 = vmatpush.bf16.msra.mxu0 %v891
      %965 = vmatpush.bf16.msra.mxu0 %v890
      %966 = vmatpush.bf16.msra.mxu0 %v889
      %967 = vmatpush.bf16.msra.mxu0 %v888
      %968 = vmatpush.bf16.msra.mxu0 %v887
      %969 = vmatmul.bf16.gmra.mxu0 %v737
      %v970 = vpop.f32.mrf.mxu0
      %v971 = vadd.f32 %v958, %v970
      %v972 = vpop.f32.mrf.mxu0
      %973 = vdwg.mxu0
      %974 = vmatpush.bf16.msra.mxu0 %v902
      %975 = vmatpush.bf16.msra.mxu0 %v901
      %976 = vmatpush.bf16.msra.mxu0 %v900
      %977 = vmatpush.bf16.msra.mxu0 %v899
      %978 = vmatpush.bf16.msra.mxu0 %v898
      %979 = vmatpush.bf16.msra.mxu0 %v897
      %980 = vmatpush.bf16.msra.mxu0 %v896
      %981 = vmatpush.bf16.msra.mxu0 %v895
      %982 = vmatmul.bf16.gmra.mxu0 %v738
      %v983 = vpop.f32.mrf.mxu0
      %v984 = vadd.f32 %v971, %v983
      %v985 = vpop.f32.mrf.mxu0
      %986 = vdwg.mxu0
      %v987 = vadd.f32 %v662, %v984
      %988 = vst [vmem:[#allocation2] sm:$0xff] %v987
      %p989 = scmp.eq.s32.totalorder %s32, 1
      // Predicated region
      $region81: #{naive_forward.1} parent=75 // pred_check
        %p990 = pneg %p989
      $region82: #{naive_forward.1} parent=75 // pred_check_branch
        %992 = sbr.rel (%p990) target = $region84
      $region83: #{naive_forward.1} parent=75 // pred_region
        %v993 = vld [vmem:[#allocation2] sm:$0xff]
        %v994 = vld [vmem:[%s2] sm:$0x1]
        %v996 = vperm.slane %v994, 0
        %v998 = vadd.f32 %v993, %v996
        %v999 = vmax.f32 %v998, 0.0
        %v1000 = vld [vmem:[%s627] sm:$0xf]
        %v1001 = vld [vmem:[%s4] sm:$0xf]
        %v1002 = vld [vmem:[%s4 + $0x4] sm:$0xf]
        %v1003 = vld [vmem:[%s4 + $0x8] sm:$0xf]
        %v1004 = vld [vmem:[%s4 + $0xc] sm:$0xf]
        %v1005 = vld [vmem:[%s4 + $0x10] sm:$0xf]
        %v1006 = vld [vmem:[%s4 + $0x14] sm:$0xf]
        %v1007 = vld [vmem:[%s4 + $0x18] sm:$0xf]
        %v1008 = vld [vmem:[%s4 + $0x1c] sm:$0xf]
        %v1009 = vld [vmem:[%s4 + $0x20] sm:$0xf]
        %v1010 = vld [vmem:[%s4 + $0x24] sm:$0xf]
        %v1011 = vld [vmem:[%s4 + $0x28] sm:$0xf]
        %v1012 = vld [vmem:[%s4 + $0x2c] sm:$0xf]
        %v1013 = vld [vmem:[%s4 + $0x30] sm:$0xf]
        %v1014 = vld [vmem:[%s4 + $0x34] sm:$0xf]
        %v1015 = vld [vmem:[%s4 + $0x38] sm:$0xf]
        %v1016 = vld [vmem:[%s4 + $0x3c] sm:$0xf]
        %v1017 = vld [vmem:[%s5] sm:$0x1]
        %v1019 = vperm.slane %v1017, 0
        %v1037 = vunpack.c.l.b16 %v1001
        %v1038 = vunpack.c.l.b16 %v1002
        %v1039 = vunpack.c.l.b16 %v1003
        %v1040 = vunpack.c.l.b16 %v1004
        %v1041 = vunpack.c.l.b16 %v1005
        %v1042 = vunpack.c.l.b16 %v1006
        %v1043 = vunpack.c.l.b16 %v1007
        %v1044 = vunpack.c.l.b16 %v1008
        %v1045 = vunpack.c.l.b16 %v1009
        %v1046 = vunpack.c.l.b16 %v1010
        %v1047 = vunpack.c.l.b16 %v1011
        %v1048 = vunpack.c.l.b16 %v1012
        %v1049 = vunpack.c.l.b16 %v1013
        %v1050 = vunpack.c.l.b16 %v1014
        %v1051 = vunpack.c.l.b16 %v1015
        %v1052 = vunpack.c.l.b16 %v1016
        %v1053 = vpack.c.b16 %v1038, %v1037
        %v1054 = vpack.c.b16 %v1040, %v1039
        %v1055 = vpack.c.b16 %v1042, %v1041
        %v1056 = vpack.c.b16 %v1044, %v1043
        %v1057 = vpack.c.b16 %v1046, %v1045
        %v1058 = vpack.c.b16 %v1048, %v1047
        %v1059 = vpack.c.b16 %v1050, %v1049
        %v1060 = vpack.c.b16 %v1052, %v1051
        %1069 = vmatpush.bf16.msra.mxu0 %v1060
        %1070 = vmatpush.bf16.msra.mxu0 %v1059
        %1071 = vmatpush.bf16.msra.mxu0 %v1058
        %1072 = vmatpush.bf16.msra.mxu0 %v1057
        %1073 = vmatpush.bf16.msra.mxu0 %v1056
        %1074 = vmatpush.bf16.msra.mxu0 %v1055
        %1075 = vmatpush.bf16.msra.mxu0 %v1054
        %1076 = vmatpush.bf16.msra.mxu0 %v1053
        %1077 = vmatmul.bf16.gmra.mxu0 %v1000
        %v1078 = vpop.f32.mrf.mxu0
        %v1079 = vadd.f32 %v1019, %v1078
        %v1080 = vpop.f32.mrf.mxu0
        %1081 = vdwg.mxu0
        %v1082 = vmax.f32 %v1079, 0.0
        %v1083 = vld [vmem:[%s631] sm:$0xf]
        %v1084 = vunpack.c.l.bf16 %v1083
        %v1085 = vmul.f32 %v1084, %v999
        %v1086 = vld [vmem:[%s635] sm:$0xf]
        %v1087 = vunpack.c.l.bf16 %v1086
        %v1088 = vadd.f32 %v1085, %v1087
        %v1089 = vld [vmem:[%s639] sm:$0xf]
        %v1090 = vunpack.c.l.bf16 %v1089
        %v1091 = vmul.f32 %v1090, %v1082
        %v1092 = vld [vmem:[%s643] sm:$0xf]
        %v1093 = vunpack.c.l.bf16 %v1092
        %v1094 = vadd.f32 %v1091, %v1093
        %v1095 = vpack.c.bf16 %v1088, %v1088
        %v1096 = vld [vmem:[%s10] sm:$0xf]
        %v1097 = vld [vmem:[%s10 + $0x4] sm:$0xf]
        %v1098 = vld [vmem:[%s10 + $0x8] sm:$0xf]
        %v1099 = vld [vmem:[%s10 + $0xc] sm:$0xf]
        %v1100 = vld [vmem:[%s10 + $0x10] sm:$0xf]
        %v1101 = vld [vmem:[%s10 + $0x14] sm:$0xf]
        %v1102 = vld [vmem:[%s10 + $0x18] sm:$0xf]
        %v1103 = vld [vmem:[%s10 + $0x1c] sm:$0xf]
        %v1104 = vld [vmem:[%s10 + $0x20] sm:$0xf]
        %v1105 = vld [vmem:[%s10 + $0x24] sm:$0xf]
        %v1106 = vld [vmem:[%s10 + $0x28] sm:$0xf]
        %v1107 = vld [vmem:[%s10 + $0x2c] sm:$0xf]
        %v1108 = vld [vmem:[%s10 + $0x30] sm:$0xf]
        %v1109 = vld [vmem:[%s10 + $0x34] sm:$0xf]
        %v1110 = vld [vmem:[%s10 + $0x38] sm:$0xf]
        %v1111 = vld [vmem:[%s10 + $0x3c] sm:$0xf]
        %v1112 = vpack.c.bf16 %v1094, %v1094
        %v1113 = vld [vmem:[%s11] sm:$0xf]
        %v1114 = vld [vmem:[%s11 + $0x4] sm:$0xf]
        %v1115 = vld [vmem:[%s11 + $0x8] sm:$0xf]
        %v1116 = vld [vmem:[%s11 + $0xc] sm:$0xf]
        %v1117 = vld [vmem:[%s11 + $0x10] sm:$0xf]
        %v1118 = vld [vmem:[%s11 + $0x14] sm:$0xf]
        %v1119 = vld [vmem:[%s11 + $0x18] sm:$0xf]
        %v1120 = vld [vmem:[%s11 + $0x1c] sm:$0xf]
        %v1121 = vld [vmem:[%s11 + $0x20] sm:$0xf]
        %v1122 = vld [vmem:[%s11 + $0x24] sm:$0xf]
        %v1123 = vld [vmem:[%s11 + $0x28] sm:$0xf]
        %v1124 = vld [vmem:[%s11 + $0x2c] sm:$0xf]
        %v1125 = vld [vmem:[%s11 + $0x30] sm:$0xf]
        %v1126 = vld [vmem:[%s11 + $0x34] sm:$0xf]
        %v1127 = vld [vmem:[%s11 + $0x38] sm:$0xf]
        %v1128 = vld [vmem:[%s11 + $0x3c] sm:$0xf]
        %v1145 = vunpack.c.l.b16 %v1113
        %v1146 = vunpack.c.l.b16 %v1114
        %v1147 = vunpack.c.l.b16 %v1115
        %v1148 = vunpack.c.l.b16 %v1116
        %v1149 = vunpack.c.l.b16 %v1117
        %v1150 = vunpack.c.l.b16 %v1118
        %v1151 = vunpack.c.l.b16 %v1119
        %v1152 = vunpack.c.l.b16 %v1120
        %v1153 = vunpack.c.l.b16 %v1121
        %v1154 = vunpack.c.l.b16 %v1122
        %v1155 = vunpack.c.l.b16 %v1123
        %v1156 = vunpack.c.l.b16 %v1124
        %v1157 = vunpack.c.l.b16 %v1125
        %v1158 = vunpack.c.l.b16 %v1126
        %v1159 = vunpack.c.l.b16 %v1127
        %v1160 = vunpack.c.l.b16 %v1128
        %v1161 = vpack.c.b16 %v1146, %v1145
        %v1162 = vpack.c.b16 %v1148, %v1147
        %v1163 = vpack.c.b16 %v1150, %v1149
        %v1164 = vpack.c.b16 %v1152, %v1151
        %v1165 = vpack.c.b16 %v1154, %v1153
        %v1166 = vpack.c.b16 %v1156, %v1155
        %v1167 = vpack.c.b16 %v1158, %v1157
        %v1168 = vpack.c.b16 %v1160, %v1159
        %1177 = vmatpush.bf16.msra.mxu0 %v1168
        %1178 = vmatpush.bf16.msra.mxu0 %v1167
        %1179 = vmatpush.bf16.msra.mxu0 %v1166
        %1180 = vmatpush.bf16.msra.mxu0 %v1165
        %1181 = vmatpush.bf16.msra.mxu0 %v1164
        %1182 = vmatpush.bf16.msra.mxu0 %v1163
        %1183 = vmatpush.bf16.msra.mxu0 %v1162
        %1184 = vmatpush.bf16.msra.mxu0 %v1161
        %1185 = vmatmul.bf16.gmra.mxu0 %v1112
        %v1186 = vpop.f32.mrf.mxu0
        %v1187 = vadd.f32 0.0, %v1186
        %v1188 = vpop.f32.mrf.mxu0
        %1189 = vdwg.mxu0
        %v1206 = vunpack.c.l.b16 %v1096
        %v1207 = vunpack.c.l.b16 %v1097
        %v1208 = vunpack.c.l.b16 %v1098
        %v1209 = vunpack.c.l.b16 %v1099
        %v1210 = vunpack.c.l.b16 %v1100
        %v1211 = vunpack.c.l.b16 %v1101
        %v1212 = vunpack.c.l.b16 %v1102
        %v1213 = vunpack.c.l.b16 %v1103
        %v1214 = vunpack.c.l.b16 %v1104
        %v1215 = vunpack.c.l.b16 %v1105
        %v1216 = vunpack.c.l.b16 %v1106
        %v1217 = vunpack.c.l.b16 %v1107
        %v1218 = vunpack.c.l.b16 %v1108
        %v1219 = vunpack.c.l.b16 %v1109
        %v1220 = vunpack.c.l.b16 %v1110
        %v1221 = vunpack.c.l.b16 %v1111
        %v1222 = vpack.c.b16 %v1207, %v1206
        %v1223 = vpack.c.b16 %v1209, %v1208
        %v1224 = vpack.c.b16 %v1211, %v1210
        %v1225 = vpack.c.b16 %v1213, %v1212
        %v1226 = vpack.c.b16 %v1215, %v1214
        %v1227 = vpack.c.b16 %v1217, %v1216
        %v1228 = vpack.c.b16 %v1219, %v1218
        %v1229 = vpack.c.b16 %v1221, %v1220
        %1238 = vmatpush.bf16.msra.mxu0 %v1229
        %1239 = vmatpush.bf16.msra.mxu0 %v1228
        %1240 = vmatpush.bf16.msra.mxu0 %v1227
        %1241 = vmatpush.bf16.msra.mxu0 %v1226
        %1242 = vmatpush.bf16.msra.mxu0 %v1225
        %1243 = vmatpush.bf16.msra.mxu0 %v1224
        %1244 = vmatpush.bf16.msra.mxu0 %v1223
        %1245 = vmatpush.bf16.msra.mxu0 %v1222
        %1246 = vmatmul.bf16.gmra.mxu0 %v1095
        %v1247 = vpop.f32.mrf.mxu0
        %v1248 = vadd.f32 %v1187, %v1247
        %v1249 = vpop.f32.mrf.mxu0
        %1250 = vdwg.mxu0
        %v1251 = vld [vmem:[%s12] sm:$0x1]
        %v1253 = vperm.slane %v1251, 0
        %v1255 = vadd.f32 %v1248, %v1253
        %v1256 = vpack.c.bf16 %v1255, %v1255
        %1257 = vst [vmem:[%s651] sm:$0xf] %v1256
        %v1258 = vld [vmem:[%s647] sm:$0xff]
        %v1259 = vsub.f32 %v1255, %v1258
        %v1260 = vlaneseq
        %v1261 = vshrl.u32 %v1260, 7
        %v1262 = vstv %s656
        %v1263 = vadd.s32 %v1262, %v1261
        %vm1264 = vcmp.lt.s32.totalorder %v1263, 2
        %v1265 = vsel %vm1264, %v1259, 0.0
        %v1266 = vmul.f32 %v1265, %v1265
        %1267 = vadd.xlane.f32.xlu0 %v1266
        %v1268 = vpop.xlane.xlu0 %1267
        %v1269 = vrot.slane %v1268, 4
        %v1270 = vadd.f32 %v1268, %v1269
        %v1271 = vrot.slane %v1270, 2
        %v1272 = vadd.f32 %v1270, %v1271
        %v1273 = vrot.slane %v1272, 1
        %v1274 = vadd.f32 %v1272, %v1273
        %s1275 = vtos %v1274
        %v1276 = vlaneseq
        %v1277 = vand.u32 %v1276, 127
        %vm1278 = vcmp.eq.s32.totalorder %v1261, 0
        %vm1279 = vcmp.eq.s32.totalorder %v1277, 0
        %vm1280 = vmand %vm1278, %vm1279
        %v1281 = vstv %s1275
        %v1282 = vsel %vm1280, %v1281, 0.0
        %1283 = vst [vmem:[%s655] sm:$0xff] %v1282
      $region84: #{naive_forward.1} parent=75 // pred_fallthru
        _
      %p1284 = scmp.lt.s32.totalorder %s31, 0
      %s1285 = scalar_select %p1284, %s31, 0
      %s1286 = smul.addr %s1285, 4
      %s1287 = scalar_lea.vmem %s14, %s1286
      %p1288 = scmp.lt.s32.totalorder %s31, 0
      %s1289 = scalar_select %p1288, %s31, 0
      %s1290 = smul.addr %s1289, 8
      %s1291 = scalar_lea.vmem %s15, %s1290
      // Predicated region
      $region85: #{naive_forward.1} parent=75 // pred_check
        %p1292 = pneg %p393
      $region86: #{naive_forward.1} parent=75 // pred_check_branch
        %1294 = sbr.rel (%p1292) target = $region88
      $region87: #{naive_forward.1} parent=75 // pred_region
        _
      $region88: #{naive_forward.1} parent=75 // pred_fallthru
        _
      // Predicated region
      $region89: #{naive_forward.1} parent=75 // pred_check
        %p1295 = pneg %p419
      $region90: #{naive_forward.1} parent=75 // pred_check_branch
        %1297 = sbr.rel (%p1295) target = $region92
      $region91: #{naive_forward.1} parent=75 // pred_region
        _
      $region92: #{naive_forward.1} parent=75 // pred_fallthru
        _
      // Predicated region
      $region93: #{naive_forward.1} parent=75 // pred_check
        %p1298 = pneg %p393
      $region94: #{naive_forward.1} parent=75 // pred_check_branch
        %1300 = sbr.rel (%p1298) target = $region96
      $region95: #{naive_forward.1} parent=75 // pred_region
        %p1301 = scmp.lt.s32.totalorder %s31, 0
        %s1302 = scalar_select %p1301, %s31, 0
        %s1303 = smul.addr %s1302, 4
        %s1304 = scalar_lea.vmem %s14, %s1303
      $region96: #{naive_forward.1} parent=75 // pred_fallthru
        _
      // Predicated region
      $region97: #{naive_forward.1} parent=75 // pred_check
        %p1305 = pneg %p419
      $region98: #{naive_forward.1} parent=75 // pred_check_branch
        %1307 = sbr.rel (%p1305) target = $region100
      $region99: #{naive_forward.1} parent=75 // pred_region
        %p1308 = scmp.lt.s32.totalorder %s31, 0
        %s1309 = scalar_select %p1308, %s31, 0
        %s1310 = smul.addr %s1309, 8
        %s1311 = scalar_lea.vmem %s15, %s1310
      $region100: #{naive_forward.1} parent=75 // pred_fallthru
        _
    $region76: #{naive_forward.1} parent=5 // pred_fallthru
      _
    %p1312 = scmp.le.s32.totalorder 2, %s22
    // Predicated region
    $region101: #{naive_forward.1} parent=5 // pred_check
      %p1313 = pneg %p1312
    $region102: #{naive_forward.1} parent=5 // pred_check_branch
      %1315 = sbr.rel (%p1313) target = $region104
    $region103: #{naive_forward.1} parent=5 // pred_region
      %s1316 = ssub.s32 %s22, 2
    $region104: #{naive_forward.1} parent=5 // pred_fallthru
      _
  $region6: #{naive_forward.1} parent=0 // loop_footer
    %s26 = sadd.s32 1, %s22
  $region7: #{naive_forward.1} parent=0 // loop_footer_branch
    %21 = sbr.rel target = $region3
  $region8: #{naive_forward.1} parent=0 // loop_exit
    _

</llo_original>
